<compile_context>
chip_gen: v5e
topology: v5e:2x2
jax: 0.10.0
libtpu: 0.0.40
codegen_flags: <defaults>
</compile_context>

<pallas_src>
import functools

import jax
import jax.numpy as jnp
from jax.experimental import pallas as pl
from jax.experimental.pallas import tpu as pltpu

EPS = 1e-5


def _dice_kernel(pred_ref, lab_ref, inter_ref, p2_ref, cnt_ref, *,
                 C, S, tS, n_inner, ragged):
    """One (batch, spatial-split) pair, one spatial tile per grid step.

    pred_ref : (1, C, tS)  native dtype  prediction tile
    lab_ref  : (1, 1, tS)  int32         label tile
    inter/p2/cnt_ref : (1, 1, C, 1) f32  accumulators (resident across the
                       inner "arbitrary" spatial axis).
    """
    o = pl.program_id(1)
    i = pl.program_id(2)

    @pl.when(i == 0)
    def _init():
        inter_ref[...] = jnp.zeros_like(inter_ref)
        p2_ref[...] = jnp.zeros_like(p2_ref)
        cnt_ref[...] = jnp.zeros_like(cnt_ref)

    pred = pred_ref[0].astype(jnp.float32)                       # (C, tS)
    lab = lab_ref[0]                                             # (1, tS) i32

    # In-kernel one-hot as a boolean compare (no 0/1 materialization).
    class_ids = jax.lax.broadcasted_iota(jnp.int32, (C, tS), 0)  # (C, tS)
    eq = lab == class_ids                                        # (C, tS) bool

    def accumulate(eq_, pred_for_inter, pred_sq):
        inter_ref[0, 0] += jnp.sum(
            jnp.where(eq_, pred_for_inter, 0.0), axis=-1, keepdims=True)
        p2_ref[0, 0] += jnp.sum(pred_sq, axis=-1, keepdims=True)
        cnt_ref[0, 0] += jnp.sum(eq_.astype(jnp.float32), axis=-1, keepdims=True)

    if not ragged:
        # Every tile is full and in-bounds: unmasked fast path.
        accumulate(eq, pred, pred * pred)
    else:
        blk = o * n_inner + i            # global spatial block index (unclamped)
        start = blk * tS
        is_tail = start + tS > S         # partial or fully out-of-range tile

        @pl.when(jnp.logical_not(is_tail))
        def _full():
            accumulate(eq, pred, pred * pred)

        @pl.when(is_tail)
        def _tail():
            lane = jax.lax.broadcasted_iota(jnp.int32, (1, tS), 1)
            valid = (start + lane) < S                           # (1, tS)
            eq_m = jnp.logical_and(eq, valid)
            pred_m = jnp.where(valid, pred, 0.0)
            accumulate(eq_m, pred, pred_m * pred_m)


def dice_loss(y_pred, y_true, num_class=36, max_tile=32768,
              vmem_budget_bytes=12 * 1024 * 1024, spatial_splits=None):
    """Pallas implementation of DiceLoss(num_class).forward(y_pred, y_true).

    y_pred : (B, num_class, D, H, W) float (any float dtype; kept native)
    y_true : (B, 1, D, H, W) int labels in [0, num_class)
    """
    B, C, D, H, W = y_pred.shape
    assert C == num_class, "channel dim of y_pred must equal num_class"
    S = D * H * W
    assert S < 2 ** 31, "int32 spatial indexing"

    pred = y_pred.reshape(B, C, S)                      # free reshape, native dtype
    lab = y_true.reshape(B, 1, S).astype(jnp.int32)     # free reshape

    # Lane tile: as large as fits the (double-buffered) VMEM budget, multiple
    # of 128, capped at max_tile; or the full spatial extent if it fits.
    pred_bytes = jnp.dtype(pred.dtype).itemsize
    bytes_per_lane = 2 * (C * pred_bytes + 4)           # 2x-buffered pred + i32 label
    fit = max(vmem_budget_bytes // bytes_per_lane, 128)
    tS = int(min(max_tile, fit))
    tS -= tS % 128
    if S <= tS:
        tS = S                                          # single (possibly ragged) tile
    n_blocks = pl.cdiv(S, tS)

    # Parallel spatial split so both v7x TensorCores have work when B is small.
    if spatial_splits is None:
        spatial_splits = 2 if B == 1 else 1
    n_outer = max(1, min(spatial_splits, n_blocks))
    n_inner = pl.cdiv(n_blocks, n_outer)
    # Any partial or fully-out-of-range tile anywhere in the (n_outer, n_inner)
    # coverage forces the masked tail path on that tile only.
    ragged = (n_outer * n_inner * tS) != S

    last_blk = n_blocks - 1
    if ragged:
        def sp_idx(o, i):
            # Clamp the DMA source so over-provisioned blocks never read OOB
            # HBM; their contribution is zeroed in-kernel via the lane mask.
            return jnp.minimum(o * n_inner + i, last_blk)
    else:
        def sp_idx(o, i):
            return o * n_inner + i

    kernel = functools.partial(_dice_kernel, C=C, S=S, tS=tS,
                               n_inner=n_inner, ragged=ragged)

    out_sd = jax.ShapeDtypeStruct((B, n_outer, C, 1), jnp.float32)
    out_spec = lambda: pl.BlockSpec((1, 1, C, 1), lambda b, o, i: (b, o, 0, 0))

    inter, p2, cnt = pl.pallas_call(
        kernel,
        out_shape=(out_sd, out_sd, out_sd),
        grid_spec=pltpu.PrefetchScalarGridSpec(
            num_scalar_prefetch=0,
            grid=(B, n_outer, n_inner),
            in_specs=[
                pl.BlockSpec((1, C, tS), lambda b, o, i: (b, 0, sp_idx(o, i))),
                pl.BlockSpec((1, 1, tS), lambda b, o, i: (b, 0, sp_idx(o, i))),
            ],
            out_specs=[out_spec(), out_spec(), out_spec()],
        ),
        compiler_params=pltpu.CompilerParams(
            dimension_semantics=("parallel", "parallel", "arbitrary")),
    )(pred, lab)

    # Tiny epilogue in JAX: fold the spatial splits, form dsc, take the mean.
    intersection = inter.sum(axis=1)[..., 0]            # (B, C)
    union = p2.sum(axis=1)[..., 0] + cnt.sum(axis=1)[..., 0]
    dsc = 2.0 * intersection / (union + EPS)
    return 1.0 - jnp.mean(dsc)


def dice_loss_ref(y_pred, y_true, num_class=36):
    """Pure-JAX reference mirroring the PyTorch module."""
    y_pred = y_pred.astype(jnp.float32)
    oh = jax.nn.one_hot(y_true, num_class, dtype=jnp.float32)  # (B,1,D,H,W,C)
    oh = jnp.squeeze(oh, axis=1)                               # (B,D,H,W,C)
    oh = jnp.transpose(oh, (0, 4, 1, 2, 3))                    # (B,C,D,H,W)
    intersection = jnp.sum(y_pred * oh, axis=(2, 3, 4))
    union = jnp.sum(y_pred ** 2, axis=(2, 3, 4)) + jnp.sum(oh ** 2, axis=(2, 3, 4))
    dsc = 2.0 * intersection / (union + EPS)
    return 1.0 - jnp.mean(dsc)


if __name__ == "__main__":
    key = jax.random.PRNGKey(0)
    k1, k2, k3, k4, k5, k6 = jax.random.split(key, 6)
    NUM_CLASS = 36

    # Test A: f32, B=2, 16^3 voxels -> single full-extent tile, batch-parallel.
    y_pred = jax.nn.softmax(
        jax.random.normal(k1, (2, NUM_CLASS, 16, 16, 16), dtype=jnp.float32), axis=1)
    y_true = jax.random.randint(k2, (2, 1, 16, 16, 16), 0, NUM_CLASS, dtype=jnp.int32)
    loss = jax.jit(functools.partial(dice_loss, num_class=NUM_CLASS))(y_pred, y_true)
    loss = jax.block_until_ready(loss)
    ref = dice_loss_ref(y_pred, y_true, NUM_CLASS)
    assert jnp.allclose(loss, ref, rtol=1e-4, atol=1e-5), (loss, ref)

    # Test B: bf16 inputs (native-dtype path, in-kernel upcast), multi-tile
    # reduction over the arbitrary axis (S=4096, tS=1024 -> 4 full tiles).
    y_pred_b = y_pred.astype(jnp.bfloat16)
    loss_b = jax.jit(
        functools.partial(dice_loss, num_class=NUM_CLASS, max_tile=1024)
    )(y_pred_b, y_true)
    loss_b = jax.block_until_ready(loss_b)
    ref_b = dice_loss_ref(y_pred_b, y_true, NUM_CLASS)
    assert jnp.allclose(loss_b, ref_b, rtol=1e-4, atol=1e-5), (loss_b, ref_b)

    # Test C: B=1 (auto spatial split across two parallel outer blocks),
    # ragged spatial extent S=7*9*11=693 with 256-lane tiles -> exercises the
    # clamped index_map, a fully out-of-range tile and the masked tail path.
    y_pred_r = jax.nn.softmax(
        jax.random.normal(k3, (1, NUM_CLASS, 7, 9, 11), dtype=jnp.float32), axis=1)
    y_true_r = jax.random.randint(k4, (1, 1, 7, 9, 11), 0, NUM_CLASS, dtype=jnp.int32)
    loss_r = jax.jit(
        functools.partial(dice_loss, num_class=NUM_CLASS, max_tile=256)
    )(y_pred_r, y_true_r)
    loss_r = jax.block_until_ready(loss_r)
    ref_r = dice_loss_ref(y_pred_r, y_true_r, NUM_CLASS)
    assert jnp.allclose(loss_r, ref_r, rtol=1e-4, atol=1e-5), (loss_r, ref_r)

    print("KERNEL_OK")
</pallas_src>

<mosaic_0001>
module attributes {stable_mosaic.version = 11 : i64} {
  func.func @_dice_kernel(%arg0: i32, %arg1: i32, %arg2: i32, %arg3: memref<1x36x4096xf32, #tpu.memory_space<vmem>>, %arg4: memref<1x1x4096xi32, #tpu.memory_space<vmem>>, %arg5: memref<1x1x36x1xf32, #tpu.memory_space<vmem>>, %arg6: memref<1x1x36x1xf32, #tpu.memory_space<vmem>>, %arg7: memref<1x1x36x1xf32, #tpu.memory_space<vmem>>) attributes {dimension_semantics = [#tpu.dimension_semantics<parallel>, #tpu.dimension_semantics<parallel>, #tpu.dimension_semantics<arbitrary>], iteration_bounds = array<i64: 2, 1, 1>, scalar_prefetch = 0 : i64, scratch_operands = 0 : i64, tpu.core_type = #tpu.core_type<tc>, window_params = [{transform_indices = @transform_0, window_bounds = array<i64: 1, 36, 4096>}, {transform_indices = @transform_1, window_bounds = array<i64: 1, 1, 4096>}, {transform_indices = @transform_2, window_bounds = array<i64: 1, 1, 36, 1>}, {transform_indices = @transform_3, window_bounds = array<i64: 1, 1, 36, 1>}, {transform_indices = @transform_4, window_bounds = array<i64: 1, 1, 36, 1>}]} {
    %c0_i32 = arith.constant 0 : i32
    %0 = arith.cmpi eq, %arg2, %c0_i32 : i32
    %1 = arith.extui %0 : i1 to i32
    %c0_i32_0 = arith.constant 0 : i32
    %2 = arith.cmpi ne, %1, %c0_i32_0 : i32
    scf.if %2 {
      %cst_33 = arith.constant 0.000000e+00 : f32
      %39 = vector.broadcast %cst_33 : f32 to vector<1x1x36x1xf32>
      %c0_34 = arith.constant 0 : index
      %c0_35 = arith.constant 0 : index
      %c0_36 = arith.constant 0 : index
      %c0_37 = arith.constant 0 : index
      %40 = vector.load %arg5[%c0_34, %c0_35, %c0_36, %c0_37] : memref<1x1x36x1xf32, #tpu.memory_space<vmem>>, vector<1x1x36x1xf32>
      tpu.vector_store %arg5[%c0_34, %c0_35, %c0_36, %c0_37], %39 {strides = array<i32>} : memref<1x1x36x1xf32, #tpu.memory_space<vmem>>, vector<1x1x36x1xf32>,
      %cst_38 = arith.constant 0.000000e+00 : f32
      %41 = vector.broadcast %cst_38 : f32 to vector<1x1x36x1xf32>
      %c0_39 = arith.constant 0 : index
      %c0_40 = arith.constant 0 : index
      %c0_41 = arith.constant 0 : index
      %c0_42 = arith.constant 0 : index
      %42 = vector.load %arg6[%c0_39, %c0_40, %c0_41, %c0_42] : memref<1x1x36x1xf32, #tpu.memory_space<vmem>>, vector<1x1x36x1xf32>
      tpu.vector_store %arg6[%c0_39, %c0_40, %c0_41, %c0_42], %41 {strides = array<i32>} : memref<1x1x36x1xf32, #tpu.memory_space<vmem>>, vector<1x1x36x1xf32>,
      %cst_43 = arith.constant 0.000000e+00 : f32
      %43 = vector.broadcast %cst_43 : f32 to vector<1x1x36x1xf32>
      %c0_44 = arith.constant 0 : index
      %c0_45 = arith.constant 0 : index
      %c0_46 = arith.constant 0 : index
      %c0_47 = arith.constant 0 : index
      %44 = vector.load %arg7[%c0_44, %c0_45, %c0_46, %c0_47] : memref<1x1x36x1xf32, #tpu.memory_space<vmem>>, vector<1x1x36x1xf32>
      tpu.vector_store %arg7[%c0_44, %c0_45, %c0_46, %c0_47], %43 {strides = array<i32>} : memref<1x1x36x1xf32, #tpu.memory_space<vmem>>, vector<1x1x36x1xf32>,
    } else {
    }
    %c0 = arith.constant 0 : index
    %c0_1 = arith.constant 0 : index
    %c0_2 = arith.constant 0 : index
    %3 = vector.load %arg3[%c0, %c0_1, %c0_2] : memref<1x36x4096xf32, #tpu.memory_space<vmem>>, vector<1x36x4096xf32>
    %4 = vector.shape_cast %3 : vector<1x36x4096xf32> to vector<36x4096xf32>
    %c0_3 = arith.constant 0 : index
    %c0_4 = arith.constant 0 : index
    %c0_5 = arith.constant 0 : index
    %5 = vector.load %arg4[%c0_3, %c0_4, %c0_5] : memref<1x1x4096xi32, #tpu.memory_space<vmem>>, vector<1x1x4096xi32>
    %6 = vector.shape_cast %5 : vector<1x1x4096xi32> to vector<1x4096xi32>
    %7 = tpu.iota {dimensions = array<i32: 0>} : vector<36x4096xi32>
    %8 = vector.broadcast %6 : vector<1x4096xi32> to vector<36x4096xi32>
    %9 = arith.cmpi eq, %8, %7 : vector<36x4096xi32>
    %10 = arith.mulf %4, %4 : vector<36x4096xf32>
    %c0_6 = arith.constant 0 : index
    %c0_7 = arith.constant 0 : index
    %c0_8 = arith.constant 0 : index
    %c0_9 = arith.constant 0 : index
    %11 = vector.load %arg5[%c0_6, %c0_7, %c0_8, %c0_9] : memref<1x1x36x1xf32, #tpu.memory_space<vmem>>, vector<1x1x36x1xf32>
    %12 = vector.shape_cast %11 : vector<1x1x36x1xf32> to vector<36x1xf32>
    %cst = arith.constant 0.000000e+00 : f32
    %13 = vector.broadcast %cst : f32 to vector<36x4096xf32>
    %14 = arith.select %9, %4, %13 : vector<36x4096xi1>, vector<36x4096xf32>
    %cst_10 = arith.constant dense<0.000000e+00> : vector<36xf32>
    %15 = vector.multi_reduction <add>, %14, %cst_10 [1] : vector<36x4096xf32> to vector<36xf32>
    %16 = vector.shape_cast %15 : vector<36xf32> to vector<36x1xf32>
    %17 = arith.addf %12, %16 : vector<36x1xf32>
    %c0_11 = arith.constant 0 : index
    %c0_12 = arith.constant 0 : index
    %c0_13 = arith.constant 0 : index
    %c0_14 = arith.constant 0 : index
    %18 = vector.load %arg5[%c0_11, %c0_12, %c0_13, %c0_14] : memref<1x1x36x1xf32, #tpu.memory_space<vmem>>, vector<1x1x36x1xf32>
    %19 = vector.shape_cast %18 : vector<1x1x36x1xf32> to vector<36x1xf32>
    %20 = vector.shape_cast %17 : vector<36x1xf32> to vector<1x1x36x1xf32>
    tpu.vector_store %arg5[%c0_11, %c0_12, %c0_13, %c0_14], %20 {strides = array<i32>} : memref<1x1x36x1xf32, #tpu.memory_space<vmem>>, vector<1x1x36x1xf32>,
    %c0_15 = arith.constant 0 : index
    %c0_16 = arith.constant 0 : index
    %c0_17 = arith.constant 0 : index
    %c0_18 = arith.constant 0 : index
    %21 = vector.load %arg6[%c0_15, %c0_16, %c0_17, %c0_18] : memref<1x1x36x1xf32, #tpu.memory_space<vmem>>, vector<1x1x36x1xf32>
    %22 = vector.shape_cast %21 : vector<1x1x36x1xf32> to vector<36x1xf32>
    %cst_19 = arith.constant dense<0.000000e+00> : vector<36xf32>
    %23 = vector.multi_reduction <add>, %10, %cst_19 [1] : vector<36x4096xf32> to vector<36xf32>
    %24 = vector.shape_cast %23 : vector<36xf32> to vector<36x1xf32>
    %25 = arith.addf %22, %24 : vector<36x1xf32>
    %c0_20 = arith.constant 0 : index
    %c0_21 = arith.constant 0 : index
    %c0_22 = arith.constant 0 : index
    %c0_23 = arith.constant 0 : index
    %26 = vector.load %arg6[%c0_20, %c0_21, %c0_22, %c0_23] : memref<1x1x36x1xf32, #tpu.memory_space<vmem>>, vector<1x1x36x1xf32>
    %27 = vector.shape_cast %26 : vector<1x1x36x1xf32> to vector<36x1xf32>
    %28 = vector.shape_cast %25 : vector<36x1xf32> to vector<1x1x36x1xf32>
    tpu.vector_store %arg6[%c0_20, %c0_21, %c0_22, %c0_23], %28 {strides = array<i32>} : memref<1x1x36x1xf32, #tpu.memory_space<vmem>>, vector<1x1x36x1xf32>,
    %c0_24 = arith.constant 0 : index
    %c0_25 = arith.constant 0 : index
    %c0_26 = arith.constant 0 : index
    %c0_27 = arith.constant 0 : index
    %29 = vector.load %arg7[%c0_24, %c0_25, %c0_26, %c0_27] : memref<1x1x36x1xf32, #tpu.memory_space<vmem>>, vector<1x1x36x1xf32>
    %30 = vector.shape_cast %29 : vector<1x1x36x1xf32> to vector<36x1xf32>
    %31 = arith.extui %9 : vector<36x4096xi1> to vector<36x4096xi32>
    %32 = arith.sitofp %31 : vector<36x4096xi32> to vector<36x4096xf32>
    %cst_28 = arith.constant dense<0.000000e+00> : vector<36xf32>
    %33 = vector.multi_reduction <add>, %32, %cst_28 [1] : vector<36x4096xf32> to vector<36xf32>
    %34 = vector.shape_cast %33 : vector<36xf32> to vector<36x1xf32>
    %35 = arith.addf %30, %34 : vector<36x1xf32>
    %c0_29 = arith.constant 0 : index
    %c0_30 = arith.constant 0 : index
    %c0_31 = arith.constant 0 : index
    %c0_32 = arith.constant 0 : index
    %36 = vector.load %arg7[%c0_29, %c0_30, %c0_31, %c0_32] : memref<1x1x36x1xf32, #tpu.memory_space<vmem>>, vector<1x1x36x1xf32>
    %37 = vector.shape_cast %36 : vector<1x1x36x1xf32> to vector<36x1xf32>
    %38 = vector.shape_cast %35 : vector<36x1xf32> to vector<1x1x36x1xf32>
    tpu.vector_store %arg7[%c0_29, %c0_30, %c0_31, %c0_32], %38 {strides = array<i32>} : memref<1x1x36x1xf32, #tpu.memory_space<vmem>>, vector<1x1x36x1xf32>,
    return
  }
  func.func @transform_0(%arg0: i32, %arg1: i32, %arg2: i32) -> (i32, i32, i32) {
    %c1_i32 = arith.constant 1 : i32
    %0 = arith.muli %arg1, %c1_i32 : i32
    %1 = arith.addi %0, %arg2 : i32
    %c0_i32 = arith.constant 0 : i32
    %c0_i32_0 = arith.constant 0 : i32
    return %arg0, %c0_i32, %1 : i32, i32, i32
  }
  func.func @transform_1(%arg0: i32, %arg1: i32, %arg2: i32) -> (i32, i32, i32) {
    %c1_i32 = arith.constant 1 : i32
    %0 = arith.muli %arg1, %c1_i32 : i32
    %1 = arith.addi %0, %arg2 : i32
    %c0_i32 = arith.constant 0 : i32
    %c0_i32_0 = arith.constant 0 : i32
    return %arg0, %c0_i32, %1 : i32, i32, i32
  }
  func.func @transform_2(%arg0: i32, %arg1: i32, %arg2: i32) -> (i32, i32, i32, i32) {
    %c0_i32 = arith.constant 0 : i32
    %c0_i32_0 = arith.constant 0 : i32
    %c0_i32_1 = arith.constant 0 : i32
    return %arg0, %arg1, %c0_i32, %c0_i32_0 : i32, i32, i32, i32
  }
  func.func @transform_3(%arg0: i32, %arg1: i32, %arg2: i32) -> (i32, i32, i32, i32) {
    %c0_i32 = arith.constant 0 : i32
    %c0_i32_0 = arith.constant 0 : i32
    %c0_i32_1 = arith.constant 0 : i32
    return %arg0, %arg1, %c0_i32, %c0_i32_0 : i32, i32, i32, i32
  }
  func.func @transform_4(%arg0: i32, %arg1: i32, %arg2: i32) -> (i32, i32, i32, i32) {
    %c0_i32 = arith.constant 0 : i32
    %c0_i32_0 = arith.constant 0 : i32
    %c0_i32_1 = arith.constant 0 : i32
    return %arg0, %arg1, %c0_i32, %c0_i32_0 : i32, i32, i32, i32
  }
}

</mosaic_0001>

<llo_original>
// kernel: dice_loss.1
$region0: #{dice_loss.1}
  #allocation0 [shape = 'u32[]', space=smem, size = 0x4, offset = 0x4, fixed_abs, tag = 'smem constant byte address 0x4 - core index']
  #allocation1 [shape = 'u32[72,128]{1,0:T(1,128)}', space=vmem, size = 0x9000, scoped, tag = 'internal scratch']
  %s0 = inlined_call_operand.vmem [shape: f32[2,36,4096], index: 0, kind: input, shape index: {}]
  %s1 = inlined_call_operand.vmem [shape: s32[2,1,4096], index: 1, kind: input, shape index: {}]
  %s2 = inlined_call_operand.vmem [shape: f32[2,1,36,1], index: 2, kind: output, shape index: {0}]
  %s3 = inlined_call_operand.vmem [shape: f32[2,1,36,1], index: 3, kind: output, shape index: {1}]
  %s4 = inlined_call_operand.vmem [shape: f32[2,1,36,1], index: 4, kind: output, shape index: {2}]
  %5 = xla_tuple %s2, %s3, %s4
  %s6 = sld [smem:[#allocation0]]
  $region61: #{dice_loss.1} parent=0
    _
  %s8 = ssub.s32 1, %s6
  %s9 = scalar_select 0, %s8, %s6
  loop: start=0, step=1, limit=4
  $region2: #{dice_loss.1} parent=0 // loop_pre_header
    _
  $region3: #{dice_loss.1} parent=0 // loop_header
    %s11 = sphi 0, %s15
    %p12 = scmp.ge.s32.totalorder %s11, 4
    %s18 = sphi 0, %s37
    %s19 = sphi 0, %s33
    %s20 = sphi 0, %s29
    %s21 = sphi 0, %s18
    %s22 = sphi 0, %s19
    %s23 = sphi 0, %s20
    %s24 = sphi 0, %s21
    %s25 = sphi 0, %s22
    %s26 = sphi 0, %s23
    %s44 = sphi 0, %s46
    %s47 = sphi 0, %s44
    %s48 = sphi 0, %s47
    %s64 = sphi 0, %s48
    %s74 = sphi 0, %s76
    %s77 = sphi 0, %s74
    %s78 = sphi 0, %s77
    %s94 = sphi 0, %s78
    %s102 = sphi 0, %s104
    %s105 = sphi 0, %s102
    %s106 = sphi 0, %s105
    %s122 = sphi 0, %s106
    %s130 = sphi 0, %s132
    %s133 = sphi 0, %s130
    %s134 = sphi 0, %s133
    %s150 = sphi 0, %s134
    %s158 = sphi 0, %s160
    %s161 = sphi 0, %s158
    %s162 = sphi 0, %s161
    %s178 = sphi 0, %s162
  $region4: #{dice_loss.1} parent=0 // loop_header_branch
    %14 = sbr.rel (%p12) target = $region8
  $region5: #{dice_loss.1} parent=0 // loop_body
    %s16 = ssub.s32 %s11, 1
    %s17 = ssub.s32 %s11, 2
    %s27 = sadd.s32 1, %s20
    %p28 = scmp.ge.s32.totalorder %s27, 1
    %s29 = scalar_select %p28, 0, %s27
    %s30 = sadd.s32 1, %s19
    %s31 = scalar_select %p28, %s30, %s19
    %p32 = scmp.ge.s32.totalorder %s31, 1
    %s33 = scalar_select %p32, 0, %s31
    %s34 = sadd.s32 1, %s18
    %s35 = scalar_select %p32, %s34, %s18
    %p36 = scmp.ge.s32.totalorder %s35, 2
    %s37 = scalar_select %p36, 0, %s35
    %s38 = sadd.s32 %s19, %s20
    %s39 = sadd.s32 %s33, %s29
    %s40 = ssub.s32 %s18, %s37
    %s41 = ssub.s32 %s38, %s39
    %s42 = sor.u32 %s40, %s41
    %p43 = scmp.eq.s32.totalorder %s42, 0
    %s45 = sadd.s32 %s44, 1
    %s46 = scalar_select %p43, %s44, %s45
    %p49 = pneg %p43
    %p50 = scmp.eq.s32.totalorder %s11, 1
    %p51 = por %p49, %p50
    %p52 = scmp.ne.s32.totalorder %s44, %s47
    %p53 = scmp.eq.s32.totalorder %s11, 0
    %p54 = por %p52, %p53
    %p55 = scmp.ne.s32.totalorder %s44, %s47
    %p56 = scmp.eq.s32.totalorder %s16, 1
    %p57 = por %p55, %p56
    %p58 = scmp.ne.s32.totalorder %s47, %s48
    %p59 = scmp.eq.s32.totalorder %s16, 0
    %p60 = por %p58, %p59
    %p61 = scmp.ne.s32.totalorder %s47, %s48
    %p62 = scmp.eq.s32.totalorder %s17, 1
    %p63 = por %p61, %p62
    %p65 = scmp.ne.s32.totalorder %s48, %s64
    %p66 = scmp.eq.s32.totalorder %s17, 0
    %p67 = por %p65, %p66
    %s68 = sadd.s32 %s19, %s20
    %s69 = sadd.s32 %s33, %s29
    %s70 = ssub.s32 %s18, %s37
    %s71 = ssub.s32 %s68, %s69
    %s72 = sor.u32 %s70, %s71
    %p73 = scmp.eq.s32.totalorder %s72, 0
    %s75 = sadd.s32 %s74, 1
    %s76 = scalar_select %p73, %s74, %s75
    %p79 = pneg %p73
    %p80 = scmp.eq.s32.totalorder %s11, 1
    %p81 = por %p79, %p80
    %p82 = scmp.ne.s32.totalorder %s74, %s77
    %p83 = scmp.eq.s32.totalorder %s11, 0
    %p84 = por %p82, %p83
    %p85 = scmp.ne.s32.totalorder %s74, %s77
    %p86 = scmp.eq.s32.totalorder %s16, 1
    %p87 = por %p85, %p86
    %p88 = scmp.ne.s32.totalorder %s77, %s78
    %p89 = scmp.eq.s32.totalorder %s16, 0
    %p90 = por %p88, %p89
    %p91 = scmp.ne.s32.totalorder %s77, %s78
    %p92 = scmp.eq.s32.totalorder %s17, 1
    %p93 = por %p91, %p92
    %p95 = scmp.ne.s32.totalorder %s78, %s94
    %p96 = scmp.eq.s32.totalorder %s17, 0
    %p97 = por %p95, %p96
    %s98 = ssub.s32 %s18, %s37
    %s99 = ssub.s32 %s19, %s33
    %s100 = sor.u32 %s98, %s99
    %p101 = scmp.eq.s32.totalorder %s100, 0
    %s103 = sadd.s32 %s102, 1
    %s104 = scalar_select %p101, %s102, %s103
    %p107 = pneg %p101
    %p108 = scmp.eq.s32.totalorder %s11, 1
    %p109 = por %p107, %p108
    %p110 = scmp.ne.s32.totalorder %s102, %s105
    %p111 = scmp.eq.s32.totalorder %s11, 0
    %p112 = por %p110, %p111
    %p113 = scmp.ne.s32.totalorder %s102, %s105
    %p114 = scmp.eq.s32.totalorder %s16, 1
    %p115 = por %p113, %p114
    %p116 = scmp.ne.s32.totalorder %s105, %s106
    %p117 = scmp.eq.s32.totalorder %s16, 0
    %p118 = por %p116, %p117
    %p119 = scmp.ne.s32.totalorder %s105, %s106
    %p120 = scmp.eq.s32.totalorder %s17, 1
    %p121 = por %p119, %p120
    %p123 = scmp.ne.s32.totalorder %s106, %s122
    %p124 = scmp.eq.s32.totalorder %s17, 0
    %p125 = por %p123, %p124
    %s126 = ssub.s32 %s18, %s37
    %s127 = ssub.s32 %s19, %s33
    %s128 = sor.u32 %s126, %s127
    %p129 = scmp.eq.s32.totalorder %s128, 0
    %s131 = sadd.s32 %s130, 1
    %s132 = scalar_select %p129, %s130, %s131
    %p135 = pneg %p129
    %p136 = scmp.eq.s32.totalorder %s11, 1
    %p137 = por %p135, %p136
    %p138 = scmp.ne.s32.totalorder %s130, %s133
    %p139 = scmp.eq.s32.totalorder %s11, 0
    %p140 = por %p138, %p139
    %p141 = scmp.ne.s32.totalorder %s130, %s133
    %p142 = scmp.eq.s32.totalorder %s16, 1
    %p143 = por %p141, %p142
    %p144 = scmp.ne.s32.totalorder %s133, %s134
    %p145 = scmp.eq.s32.totalorder %s16, 0
    %p146 = por %p144, %p145
    %p147 = scmp.ne.s32.totalorder %s133, %s134
    %p148 = scmp.eq.s32.totalorder %s17, 1
    %p149 = por %p147, %p148
    %p151 = scmp.ne.s32.totalorder %s134, %s150
    %p152 = scmp.eq.s32.totalorder %s17, 0
    %p153 = por %p151, %p152
    %s154 = ssub.s32 %s18, %s37
    %s155 = ssub.s32 %s19, %s33
    %s156 = sor.u32 %s154, %s155
    %p157 = scmp.eq.s32.totalorder %s156, 0
    %s159 = sadd.s32 %s158, 1
    %s160 = scalar_select %p157, %s158, %s159
    %p163 = pneg %p157
    %p164 = scmp.eq.s32.totalorder %s11, 1
    %p165 = por %p163, %p164
    %p166 = scmp.ne.s32.totalorder %s158, %s161
    %p167 = scmp.eq.s32.totalorder %s11, 0
    %p168 = por %p166, %p167
    %p169 = scmp.ne.s32.totalorder %s158, %s161
    %p170 = scmp.eq.s32.totalorder %s16, 1
    %p171 = por %p169, %p170
    %p172 = scmp.ne.s32.totalorder %s161, %s162
    %p173 = scmp.eq.s32.totalorder %s16, 0
    %p174 = por %p172, %p173
    %p175 = scmp.ne.s32.totalorder %s161, %s162
    %p176 = scmp.eq.s32.totalorder %s17, 1
    %p177 = por %p175, %p176
    %p179 = scmp.ne.s32.totalorder %s162, %s178
    %p180 = scmp.eq.s32.totalorder %s17, 0
    %p181 = por %p179, %p180
    %p182 = scmp.le.s32.totalorder 1, %s11
    %p183 = scmp.lt.s32.totalorder %s11, 3
    %p184 = pnand %p182, %p183
    %p185 = pneg %p184
    // Predicated region
    $region9: #{dice_loss.1} parent=5 // pred_check
      _
    $region10: #{dice_loss.1} parent=5 // pred_check_branch
      %187 = sbr.rel (%p184) target = $region12
    $region11: #{dice_loss.1} parent=5 // pred_region
      %s188 = ssub.s32 %s11, 1
    $region12: #{dice_loss.1} parent=5 // pred_fallthru
      _
    %p189 = scmp.lt.s32.totalorder %s11, 2
    // Predicated region
    $region13: #{dice_loss.1} parent=5 // pred_check
      %p190 = pneg %p189
    $region14: #{dice_loss.1} parent=5 // pred_check_branch
      %192 = sbr.rel (%p190) target = $region16
    $region15: #{dice_loss.1} parent=5 // pred_region
      // Predicated region
      $region17: #{dice_loss.1} parent=15 // pred_check
        %p193 = pneg %p54
      $region18: #{dice_loss.1} parent=15 // pred_check_branch
        %195 = sbr.rel (%p193) target = $region20
      $region19: #{dice_loss.1} parent=15 // pred_region
        %s196 = sadd.s32 %s19, %s20
        %s197 = smul.u32 32, %s196
        %p198 = scmp.lt.s32.totalorder %s18, 1
        %s199 = scalar_select %p198, %s18, 1
        %p200 = scmp.lt.s32.totalorder %s197, 31
        %s201 = scalar_select %p200, %s197, 31
        %s202 = smul.addr %s199, 160
        %s203 = sadd.s32 %s201, %s202
        %s204 = smul.addr %s203, 8
        %s205 = scalar_lea.vmem %s0, %s204
        %s206 = sadd.s32 %s19, %s20
        %s207 = smul.u32 32, %s206
      $region20: #{dice_loss.1} parent=15 // pred_fallthru
        _
      // Predicated region
      $region21: #{dice_loss.1} parent=15 // pred_check
        %p208 = pneg %p84
      $region22: #{dice_loss.1} parent=15 // pred_check_branch
        %210 = sbr.rel (%p208) target = $region24
      $region23: #{dice_loss.1} parent=15 // pred_region
        %s211 = sadd.s32 %s19, %s20
        %s212 = smul.u32 32, %s211
        %p213 = scmp.lt.s32.totalorder %s18, 1
        %s214 = scalar_select %p213, %s18, 1
        %p215 = scmp.lt.s32.totalorder %s212, 31
        %s216 = scalar_select %p215, %s212, 31
        %s217 = smul.addr %s214, 32
        %s218 = sadd.s32 %s216, %s217
        %s219 = scalar_lea.vmem %s1, %s218
        %s220 = sadd.s32 %s19, %s20
        %s221 = smul.u32 32, %s220
      $region24: #{dice_loss.1} parent=15 // pred_fallthru
        _
    $region16: #{dice_loss.1} parent=5 // pred_fallthru
      _
    %p222 = scmp.le.s32.totalorder 1, %s11
    %p223 = scmp.lt.s32.totalorder %s11, 3
    %p224 = pnand %p222, %p223
    %p225 = pneg %p224
    // Predicated region
    $region25: #{dice_loss.1} parent=5 // pred_check
      _
    $region26: #{dice_loss.1} parent=5 // pred_check_branch
      %227 = sbr.rel (%p224) target = $region28
    $region27: #{dice_loss.1} parent=5 // pred_region
      %s228 = ssub.s32 %s11, 1
      %s229 = sadd.s32 %s22, %s23
      %s230 = smul.u32 32, %s229
      %p231 = scmp.lt.s32.totalorder %s21, 1
      %s232 = scalar_select %p231, %s21, 1
      %p233 = scmp.lt.s32.totalorder %s230, 31
      %s234 = scalar_select %p233, %s230, 31
      %s235 = smul.addr %s232, 160
      %s236 = sadd.s32 %s234, %s235
      %s237 = smul.addr %s236, 8
      %s238 = scalar_lea.vmem %s0, %s237
      %p239 = pneg %p60
      %p240 = pneg %p57
      %s241 = sadd.s32 %s22, %s23
      %s242 = smul.u32 32, %s241
      %p243 = scmp.lt.s32.totalorder %s21, 1
      %s244 = scalar_select %p243, %s21, 1
      %p245 = scmp.lt.s32.totalorder %s242, 31
      %s246 = scalar_select %p245, %s242, 31
      %s247 = smul.addr %s244, 32
      %s248 = sadd.s32 %s246, %s247
      %s249 = scalar_lea.vmem %s1, %s248
      %p250 = pneg %p90
      %p251 = pneg %p87
      %p252 = pneg %p118
      %p253 = pneg %p115
      %p254 = scmp.lt.s32.totalorder %s21, 1
      %s255 = scalar_select %p254, %s21, 1
      %p256 = scmp.lt.s32.totalorder %s22, 0
      %s257 = scalar_select %p256, %s22, 0
      %s258 = smul.addr %s257, 5
      %s259 = smul.addr %s255, 5
      %s260 = sadd.s32 %s258, %s259
      %s261 = smul.addr %s260, 8
      %s262 = scalar_lea.vmem %s2, %s261
      %p263 = pneg %p146
      %p264 = pneg %p143
      %p265 = scmp.lt.s32.totalorder %s21, 1
      %s266 = scalar_select %p265, %s21, 1
      %p267 = scmp.lt.s32.totalorder %s22, 0
      %s268 = scalar_select %p267, %s22, 0
      %s269 = smul.addr %s268, 5
      %s270 = smul.addr %s266, 5
      %s271 = sadd.s32 %s269, %s270
      %s272 = smul.addr %s271, 8
      %s273 = scalar_lea.vmem %s3, %s272
      %p274 = pneg %p174
      %p275 = pneg %p171
      %p276 = scmp.lt.s32.totalorder %s21, 1
      %s277 = scalar_select %p276, %s21, 1
      %p278 = scmp.lt.s32.totalorder %s22, 0
      %s279 = scalar_select %p278, %s22, 0
      %s280 = smul.addr %s279, 5
      %s281 = smul.addr %s277, 5
      %s282 = sadd.s32 %s280, %s281
      %s283 = smul.addr %s282, 8
      %s284 = scalar_lea.vmem %s4, %s283
      %s285 = sadd.s32 %s22, %s23
      %s286 = smul.u32 32, %s285
      %p287 = scmp.lt.s32.totalorder %s21, 1
      %s288 = scalar_select %p287, %s21, 1
      %p289 = scmp.lt.s32.totalorder %s286, 31
      %s290 = scalar_select %p289, %s286, 31
      %s291 = smul.addr %s288, 160
      %s292 = sadd.s32 %s290, %s291
      %s293 = smul.addr %s292, 8
      %s294 = scalar_lea.vmem %s0, %s293
      %s295 = sadd.s32 %s22, %s23
      %s296 = smul.u32 32, %s295
      %s297 = sadd.s32 %s22, %s23
      %s298 = smul.u32 32, %s297
      %p299 = scmp.lt.s32.totalorder %s21, 1
      %s300 = scalar_select %p299, %s21, 1
      %p301 = scmp.lt.s32.totalorder %s298, 31
      %s302 = scalar_select %p301, %s298, 31
      %s303 = smul.addr %s300, 32
      %s304 = sadd.s32 %s302, %s303
      %s305 = scalar_lea.vmem %s1, %s304
      %s306 = sadd.s32 %s22, %s23
      %s307 = smul.u32 32, %s306
      %p308 = scmp.lt.s32.totalorder %s21, 1
      %s309 = scalar_select %p308, %s21, 1
      %p310 = scmp.lt.s32.totalorder %s22, 0
      %s311 = scalar_select %p310, %s22, 0
      %s312 = smul.addr %s311, 5
      %s313 = smul.addr %s309, 5
      %s314 = sadd.s32 %s312, %s313
      %s315 = smul.addr %s314, 8
      %s316 = scalar_lea.vmem %s2, %s315
      %p317 = scmp.lt.s32.totalorder %s21, 1
      %s318 = scalar_select %p317, %s21, 1
      %p319 = scmp.lt.s32.totalorder %s22, 0
      %s320 = scalar_select %p319, %s22, 0
      %s321 = smul.addr %s320, 5
      %s322 = smul.addr %s318, 5
      %s323 = sadd.s32 %s321, %s322
      %s324 = smul.addr %s323, 8
      %s325 = scalar_lea.vmem %s3, %s324
      %p326 = scmp.lt.s32.totalorder %s21, 1
      %s327 = scalar_select %p326, %s21, 1
      %p328 = scmp.lt.s32.totalorder %s22, 0
      %s329 = scalar_select %p328, %s22, 0
      %s330 = smul.addr %s329, 5
      %s331 = smul.addr %s327, 5
      %s332 = sadd.s32 %s330, %s331
      %s333 = smul.addr %s332, 8
      %s334 = scalar_lea.vmem %s4, %s333
      %p335 = scmp.eq.s32.totalorder %s23, 0
      // Predicated region
      $region29: #{dice_loss.1} parent=27 // pred_check
        %p336 = pneg %p335
      $region30: #{dice_loss.1} parent=27 // pred_check_branch
        %338 = sbr.rel (%p336) target = $region32
      $region31: #{dice_loss.1} parent=27 // pred_region
        %vm339 = vcmask 7168
        %340 = vst.msk [vmem:[%s316] sm:$0xff] %vm339, 0.0
        %341 = vst.msk [vmem:[%s316 + $0x8] sm:$0xff] %vm339, 0.0
        %342 = vst.msk [vmem:[%s316 + $0x10] sm:$0xff] %vm339, 0.0
        %343 = vst.msk [vmem:[%s316 + $0x18] sm:$0xff] %vm339, 0.0
        %vm344 = vcmask 3072
        %345 = vst.msk [vmem:[%s316 + $0x20] sm:$0xf] %vm344, 0.0
        %346 = vst.msk [vmem:[%s325] sm:$0xff] %vm339, 0.0
        %347 = vst.msk [vmem:[%s325 + $0x8] sm:$0xff] %vm339, 0.0
        %348 = vst.msk [vmem:[%s325 + $0x10] sm:$0xff] %vm339, 0.0
        %349 = vst.msk [vmem:[%s325 + $0x18] sm:$0xff] %vm339, 0.0
        %350 = vst.msk [vmem:[%s325 + $0x20] sm:$0xf] %vm344, 0.0
        %351 = vst.msk [vmem:[%s334] sm:$0xff] %vm339, 0.0
        %352 = vst.msk [vmem:[%s334 + $0x8] sm:$0xff] %vm339, 0.0
        %353 = vst.msk [vmem:[%s334 + $0x10] sm:$0xff] %vm339, 0.0
        %354 = vst.msk [vmem:[%s334 + $0x18] sm:$0xff] %vm339, 0.0
        %355 = vst.msk [vmem:[%s334 + $0x20] sm:$0xf] %vm344, 0.0
      $region32: #{dice_loss.1} parent=27 // pred_fallthru
        _
      %v356 = vld [vmem:[%s294] sm:$0xff]
      %v357 = vld [vmem:[%s294 + $0x8] sm:$0xff]
      %v358 = vld [vmem:[%s294 + $0x10] sm:$0xff]
      %v359 = vld [vmem:[%s294 + $0x18] sm:$0xff]
      %v360 = vld [vmem:[%s294 + $0x20] sm:$0xff]
      %v361 = vld [vmem:[%s294 + $0x28] sm:$0xff]
      %v362 = vld [vmem:[%s294 + $0x30] sm:$0xff]
      %v363 = vld [vmem:[%s294 + $0x38] sm:$0xff]
      %v364 = vld [vmem:[%s294 + $0x40] sm:$0xff]
      %v365 = vld [vmem:[%s294 + $0x48] sm:$0xff]
      %v366 = vld [vmem:[%s294 + $0x50] sm:$0xff]
      %v367 = vld [vmem:[%s294 + $0x58] sm:$0xff]
      %v368 = vld [vmem:[%s294 + $0x60] sm:$0xff]
      %v369 = vld [vmem:[%s294 + $0x68] sm:$0xff]
      %v370 = vld [vmem:[%s294 + $0x70] sm:$0xff]
      %v371 = vld [vmem:[%s294 + $0x78] sm:$0xff]
      %v372 = vld [vmem:[%s294 + $0x80] sm:$0xff]
      %v373 = vld [vmem:[%s294 + $0x88] sm:$0xff]
      %v374 = vld [vmem:[%s294 + $0x90] sm:$0xff]
      %v375 = vld [vmem:[%s294 + $0x98] sm:$0xff]
      %v376 = vld [vmem:[%s294 + $0xa0] sm:$0xff]
      %v377 = vld [vmem:[%s294 + $0xa8] sm:$0xff]
      %v378 = vld [vmem:[%s294 + $0xb0] sm:$0xff]
      %v379 = vld [vmem:[%s294 + $0xb8] sm:$0xff]
      %v380 = vld [vmem:[%s294 + $0xc0] sm:$0xff]
      %v381 = vld [vmem:[%s294 + $0xc8] sm:$0xff]
      %v382 = vld [vmem:[%s294 + $0xd0] sm:$0xff]
      %v383 = vld [vmem:[%s294 + $0xd8] sm:$0xff]
      %v384 = vld [vmem:[%s294 + $0xe0] sm:$0xff]
      %v385 = vld [vmem:[%s294 + $0xe8] sm:$0xff]
      %v386 = vld [vmem:[%s294 + $0xf0] sm:$0xff]
      %v387 = vld [vmem:[%s294 + $0xf8] sm:$0xff]
      %v388 = vld [vmem:[%s294 + $0x100] sm:$0xff]
      %v389 = vld [vmem:[%s294 + $0x108] sm:$0xff]
      %v390 = vld [vmem:[%s294 + $0x110] sm:$0xff]
      %v391 = vld [vmem:[%s294 + $0x118] sm:$0xff]
      %v392 = vld [vmem:[%s294 + $0x120] sm:$0xff]
      %v393 = vld [vmem:[%s294 + $0x128] sm:$0xff]
      %v394 = vld [vmem:[%s294 + $0x130] sm:$0xff]
      %v395 = vld [vmem:[%s294 + $0x138] sm:$0xff]
      %v396 = vld [vmem:[%s294 + $0x140] sm:$0xff]
      %v397 = vld [vmem:[%s294 + $0x148] sm:$0xff]
      %v398 = vld [vmem:[%s294 + $0x150] sm:$0xff]
      %v399 = vld [vmem:[%s294 + $0x158] sm:$0xff]
      %v400 = vld [vmem:[%s294 + $0x160] sm:$0xff]
      %v401 = vld [vmem:[%s294 + $0x168] sm:$0xff]
      %v402 = vld [vmem:[%s294 + $0x170] sm:$0xff]
      %v403 = vld [vmem:[%s294 + $0x178] sm:$0xff]
      %v404 = vld [vmem:[%s294 + $0x180] sm:$0xff]
      %v405 = vld [vmem:[%s294 + $0x188] sm:$0xff]
      %v406 = vld [vmem:[%s294 + $0x190] sm:$0xff]
      %v407 = vld [vmem:[%s294 + $0x198] sm:$0xff]
      %v408 = vld [vmem:[%s294 + $0x1a0] sm:$0xff]
      %v409 = vld [vmem:[%s294 + $0x1a8] sm:$0xff]
      %v410 = vld [vmem:[%s294 + $0x1b0] sm:$0xff]
      %v411 = vld [vmem:[%s294 + $0x1b8] sm:$0xff]
      %v412 = vld [vmem:[%s294 + $0x1c0] sm:$0xff]
      %v413 = vld [vmem:[%s294 + $0x1c8] sm:$0xff]
      %v414 = vld [vmem:[%s294 + $0x1d0] sm:$0xff]
      %v415 = vld [vmem:[%s294 + $0x1d8] sm:$0xff]
      %v416 = vld [vmem:[%s294 + $0x1e0] sm:$0xff]
      %v417 = vld [vmem:[%s294 + $0x1e8] sm:$0xff]
      %v418 = vld [vmem:[%s294 + $0x1f0] sm:$0xff]
      %v419 = vld [vmem:[%s294 + $0x1f8] sm:$0xff]
      %v420 = vld [vmem:[%s294 + $0x200] sm:$0xff]
      %v421 = vld [vmem:[%s294 + $0x208] sm:$0xff]
      %v422 = vld [vmem:[%s294 + $0x210] sm:$0xff]
      %v423 = vld [vmem:[%s294 + $0x218] sm:$0xff]
      %v424 = vld [vmem:[%s294 + $0x220] sm:$0xff]
      %v425 = vld [vmem:[%s294 + $0x228] sm:$0xff]
      %v426 = vld [vmem:[%s294 + $0x230] sm:$0xff]
      %v427 = vld [vmem:[%s294 + $0x238] sm:$0xff]
      %v428 = vld [vmem:[%s294 + $0x240] sm:$0xff]
      %v429 = vld [vmem:[%s294 + $0x248] sm:$0xff]
      %v430 = vld [vmem:[%s294 + $0x250] sm:$0xff]
      %v431 = vld [vmem:[%s294 + $0x258] sm:$0xff]
      %v432 = vld [vmem:[%s294 + $0x260] sm:$0xff]
      %v433 = vld [vmem:[%s294 + $0x268] sm:$0xff]
      %v434 = vld [vmem:[%s294 + $0x270] sm:$0xff]
      %v435 = vld [vmem:[%s294 + $0x278] sm:$0xff]
      %v436 = vld [vmem:[%s294 + $0x280] sm:$0xff]
      %v437 = vld [vmem:[%s294 + $0x288] sm:$0xff]
      %v438 = vld [vmem:[%s294 + $0x290] sm:$0xff]
      %v439 = vld [vmem:[%s294 + $0x298] sm:$0xff]
      %v440 = vld [vmem:[%s294 + $0x2a0] sm:$0xff]
      %v441 = vld [vmem:[%s294 + $0x2a8] sm:$0xff]
      %v442 = vld [vmem:[%s294 + $0x2b0] sm:$0xff]
      %v443 = vld [vmem:[%s294 + $0x2b8] sm:$0xff]
      %v444 = vld [vmem:[%s294 + $0x2c0] sm:$0xff]
      %v445 = vld [vmem:[%s294 + $0x2c8] sm:$0xff]
      %v446 = vld [vmem:[%s294 + $0x2d0] sm:$0xff]
      %v447 = vld [vmem:[%s294 + $0x2d8] sm:$0xff]
      %v448 = vld [vmem:[%s294 + $0x2e0] sm:$0xff]
      %v449 = vld [vmem:[%s294 + $0x2e8] sm:$0xff]
      %v450 = vld [vmem:[%s294 + $0x2f0] sm:$0xff]
      %v451 = vld [vmem:[%s294 + $0x2f8] sm:$0xff]
      %v452 = vld [vmem:[%s294 + $0x300] sm:$0xff]
      %v453 = vld [vmem:[%s294 + $0x308] sm:$0xff]
      %v454 = vld [vmem:[%s294 + $0x310] sm:$0xff]
      %v455 = vld [vmem:[%s294 + $0x318] sm:$0xff]
      %v456 = vld [vmem:[%s294 + $0x320] sm:$0xff]
      %v457 = vld [vmem:[%s294 + $0x328] sm:$0xff]
      %v458 = vld [vmem:[%s294 + $0x330] sm:$0xff]
      %v459 = vld [vmem:[%s294 + $0x338] sm:$0xff]
      %v460 = vld [vmem:[%s294 + $0x340] sm:$0xff]
      %v461 = vld [vmem:[%s294 + $0x348] sm:$0xff]
      %v462 = vld [vmem:[%s294 + $0x350] sm:$0xff]
      %v463 = vld [vmem:[%s294 + $0x358] sm:$0xff]
      %v464 = vld [vmem:[%s294 + $0x360] sm:$0xff]
      %v465 = vld [vmem:[%s294 + $0x368] sm:$0xff]
      %v466 = vld [vmem:[%s294 + $0x370] sm:$0xff]
      %v467 = vld [vmem:[%s294 + $0x378] sm:$0xff]
      %v468 = vld [vmem:[%s294 + $0x380] sm:$0xff]
      %v469 = vld [vmem:[%s294 + $0x388] sm:$0xff]
      %v470 = vld [vmem:[%s294 + $0x390] sm:$0xff]
      %v471 = vld [vmem:[%s294 + $0x398] sm:$0xff]
      %v472 = vld [vmem:[%s294 + $0x3a0] sm:$0xff]
      %v473 = vld [vmem:[%s294 + $0x3a8] sm:$0xff]
      %v474 = vld [vmem:[%s294 + $0x3b0] sm:$0xff]
      %v475 = vld [vmem:[%s294 + $0x3b8] sm:$0xff]
      %v476 = vld [vmem:[%s294 + $0x3c0] sm:$0xff]
      %v477 = vld [vmem:[%s294 + $0x3c8] sm:$0xff]
      %v478 = vld [vmem:[%s294 + $0x3d0] sm:$0xff]
      %v479 = vld [vmem:[%s294 + $0x3d8] sm:$0xff]
      %v480 = vld [vmem:[%s294 + $0x3e0] sm:$0xff]
      %v481 = vld [vmem:[%s294 + $0x3e8] sm:$0xff]
      %v482 = vld [vmem:[%s294 + $0x3f0] sm:$0xff]
      %v483 = vld [vmem:[%s294 + $0x3f8] sm:$0xff]
      %v484 = vld [vmem:[%s294 + $0x400] sm:$0xf]
      %v485 = vld [vmem:[%s294 + $0x408] sm:$0xf]
      %v486 = vld [vmem:[%s294 + $0x410] sm:$0xf]
      %v487 = vld [vmem:[%s294 + $0x418] sm:$0xf]
      %v488 = vld [vmem:[%s294 + $0x420] sm:$0xf]
      %v489 = vld [vmem:[%s294 + $0x428] sm:$0xf]
      %v490 = vld [vmem:[%s294 + $0x430] sm:$0xf]
      %v491 = vld [vmem:[%s294 + $0x438] sm:$0xf]
      %v492 = vld [vmem:[%s294 + $0x440] sm:$0xf]
      %v493 = vld [vmem:[%s294 + $0x448] sm:$0xf]
      %v494 = vld [vmem:[%s294 + $0x450] sm:$0xf]
      %v495 = vld [vmem:[%s294 + $0x458] sm:$0xf]
      %v496 = vld [vmem:[%s294 + $0x460] sm:$0xf]
      %v497 = vld [vmem:[%s294 + $0x468] sm:$0xf]
      %v498 = vld [vmem:[%s294 + $0x470] sm:$0xf]
      %v499 = vld [vmem:[%s294 + $0x478] sm:$0xf]
      %v500 = vld [vmem:[%s294 + $0x480] sm:$0xf]
      %v501 = vld [vmem:[%s294 + $0x488] sm:$0xf]
      %v502 = vld [vmem:[%s294 + $0x490] sm:$0xf]
      %v503 = vld [vmem:[%s294 + $0x498] sm:$0xf]
      %v504 = vld [vmem:[%s294 + $0x4a0] sm:$0xf]
      %v505 = vld [vmem:[%s294 + $0x4a8] sm:$0xf]
      %v506 = vld [vmem:[%s294 + $0x4b0] sm:$0xf]
      %v507 = vld [vmem:[%s294 + $0x4b8] sm:$0xf]
      %v508 = vld [vmem:[%s294 + $0x4c0] sm:$0xf]
      %v509 = vld [vmem:[%s294 + $0x4c8] sm:$0xf]
      %v510 = vld [vmem:[%s294 + $0x4d0] sm:$0xf]
      %v511 = vld [vmem:[%s294 + $0x4d8] sm:$0xf]
      %v512 = vld [vmem:[%s294 + $0x4e0] sm:$0xf]
      %v513 = vld [vmem:[%s294 + $0x4e8] sm:$0xf]
      %v514 = vld [vmem:[%s294 + $0x4f0] sm:$0xf]
      %v515 = vld [vmem:[%s294 + $0x4f8] sm:$0xf]
      %v516 = vld [vmem:[%s305] sm:$0xff]
      %v517 = vld [vmem:[%s305 + $0x8] sm:$0xff]
      %v518 = vld [vmem:[%s305 + $0x10] sm:$0xff]
      %v519 = vld [vmem:[%s305 + $0x18] sm:$0xff]
      %v520 = vlaneseq
      %v521 = vshrl.u32 %v520, 7
      %v522 = vadd.s32 %v521, 8
      %v523 = vadd.s32 %v521, 16
      %v524 = vadd.s32 %v521, 24
      %v525 = vadd.s32 %v521, 32
      %v526 = vperm.slane %v516, 0
      %v527 = vperm.slane %v516, 1
      %v528 = vperm.slane %v516, 2
      %v529 = vperm.slane %v516, 3
      %v530 = vperm.slane %v516, 4
      %v531 = vperm.slane %v516, 5
      %v532 = vperm.slane %v516, 6
      %v533 = vperm.slane %v516, 7
      %v534 = vperm.slane %v517, 0
      %v535 = vperm.slane %v517, 1
      %v536 = vperm.slane %v517, 2
      %v537 = vperm.slane %v517, 3
      %v538 = vperm.slane %v517, 4
      %v539 = vperm.slane %v517, 5
      %v540 = vperm.slane %v517, 6
      %v541 = vperm.slane %v517, 7
      %v542 = vperm.slane %v518, 0
      %v543 = vperm.slane %v518, 1
      %v544 = vperm.slane %v518, 2
      %v545 = vperm.slane %v518, 3
      %v546 = vperm.slane %v518, 4
      %v547 = vperm.slane %v518, 5
      %v548 = vperm.slane %v518, 6
      %v549 = vperm.slane %v518, 7
      %v550 = vperm.slane %v519, 0
      %v551 = vperm.slane %v519, 1
      %v552 = vperm.slane %v519, 2
      %v553 = vperm.slane %v519, 3
      %v554 = vperm.slane %v519, 4
      %v555 = vperm.slane %v519, 5
      %v556 = vperm.slane %v519, 6
      %v557 = vperm.slane %v519, 7
      %vm558 = vcmp.eq.s32.totalorder %v526, %v521
      %vm559 = vcmp.eq.s32.totalorder %v527, %v521
      %vm560 = vcmp.eq.s32.totalorder %v528, %v521
      %vm561 = vcmp.eq.s32.totalorder %v529, %v521
      %vm562 = vcmp.eq.s32.totalorder %v530, %v521
      %vm563 = vcmp.eq.s32.totalorder %v531, %v521
      %vm564 = vcmp.eq.s32.totalorder %v532, %v521
      %vm565 = vcmp.eq.s32.totalorder %v533, %v521
      %vm566 = vcmp.eq.s32.totalorder %v534, %v521
      %vm567 = vcmp.eq.s32.totalorder %v535, %v521
      %vm568 = vcmp.eq.s32.totalorder %v536, %v521
      %vm569 = vcmp.eq.s32.totalorder %v537, %v521
      %vm570 = vcmp.eq.s32.totalorder %v538, %v521
      %vm571 = vcmp.eq.s32.totalorder %v539, %v521
      %vm572 = vcmp.eq.s32.totalorder %v540, %v521
      %vm573 = vcmp.eq.s32.totalorder %v541, %v521
      %vm574 = vcmp.eq.s32.totalorder %v542, %v521
      %vm575 = vcmp.eq.s32.totalorder %v543, %v521
      %vm576 = vcmp.eq.s32.totalorder %v544, %v521
      %vm577 = vcmp.eq.s32.totalorder %v545, %v521
      %vm578 = vcmp.eq.s32.totalorder %v546, %v521
      %vm579 = vcmp.eq.s32.totalorder %v547, %v521
      %vm580 = vcmp.eq.s32.totalorder %v548, %v521
      %vm581 = vcmp.eq.s32.totalorder %v549, %v521
      %vm582 = vcmp.eq.s32.totalorder %v550, %v521
      %vm583 = vcmp.eq.s32.totalorder %v551, %v521
      %vm584 = vcmp.eq.s32.totalorder %v552, %v521
      %vm585 = vcmp.eq.s32.totalorder %v553, %v521
      %vm586 = vcmp.eq.s32.totalorder %v554, %v521
      %vm587 = vcmp.eq.s32.totalorder %v555, %v521
      %vm588 = vcmp.eq.s32.totalorder %v556, %v521
      %vm589 = vcmp.eq.s32.totalorder %v557, %v521
      %vm590 = vcmp.eq.s32.totalorder %v526, %v522
      %vm591 = vcmp.eq.s32.totalorder %v527, %v522
      %vm592 = vcmp.eq.s32.totalorder %v528, %v522
      %vm593 = vcmp.eq.s32.totalorder %v529, %v522
      %vm594 = vcmp.eq.s32.totalorder %v530, %v522
      %vm595 = vcmp.eq.s32.totalorder %v531, %v522
      %vm596 = vcmp.eq.s32.totalorder %v532, %v522
      %vm597 = vcmp.eq.s32.totalorder %v533, %v522
      %vm598 = vcmp.eq.s32.totalorder %v534, %v522
      %vm599 = vcmp.eq.s32.totalorder %v535, %v522
      %vm600 = vcmp.eq.s32.totalorder %v536, %v522
      %vm601 = vcmp.eq.s32.totalorder %v537, %v522
      %vm602 = vcmp.eq.s32.totalorder %v538, %v522
      %vm603 = vcmp.eq.s32.totalorder %v539, %v522
      %vm604 = vcmp.eq.s32.totalorder %v540, %v522
      %vm605 = vcmp.eq.s32.totalorder %v541, %v522
      %vm606 = vcmp.eq.s32.totalorder %v542, %v522
      %vm607 = vcmp.eq.s32.totalorder %v543, %v522
      %vm608 = vcmp.eq.s32.totalorder %v544, %v522
      %vm609 = vcmp.eq.s32.totalorder %v545, %v522
      %vm610 = vcmp.eq.s32.totalorder %v546, %v522
      %vm611 = vcmp.eq.s32.totalorder %v547, %v522
      %vm612 = vcmp.eq.s32.totalorder %v548, %v522
      %vm613 = vcmp.eq.s32.totalorder %v549, %v522
      %vm614 = vcmp.eq.s32.totalorder %v550, %v522
      %vm615 = vcmp.eq.s32.totalorder %v551, %v522
      %vm616 = vcmp.eq.s32.totalorder %v552, %v522
      %vm617 = vcmp.eq.s32.totalorder %v553, %v522
      %vm618 = vcmp.eq.s32.totalorder %v554, %v522
      %vm619 = vcmp.eq.s32.totalorder %v555, %v522
      %vm620 = vcmp.eq.s32.totalorder %v556, %v522
      %vm621 = vcmp.eq.s32.totalorder %v557, %v522
      %vm622 = vcmp.eq.s32.totalorder %v526, %v523
      %vm623 = vcmp.eq.s32.totalorder %v527, %v523
      %vm624 = vcmp.eq.s32.totalorder %v528, %v523
      %vm625 = vcmp.eq.s32.totalorder %v529, %v523
      %vm626 = vcmp.eq.s32.totalorder %v530, %v523
      %vm627 = vcmp.eq.s32.totalorder %v531, %v523
      %vm628 = vcmp.eq.s32.totalorder %v532, %v523
      %vm629 = vcmp.eq.s32.totalorder %v533, %v523
      %vm630 = vcmp.eq.s32.totalorder %v534, %v523
      %vm631 = vcmp.eq.s32.totalorder %v535, %v523
      %vm632 = vcmp.eq.s32.totalorder %v536, %v523
      %vm633 = vcmp.eq.s32.totalorder %v537, %v523
      %vm634 = vcmp.eq.s32.totalorder %v538, %v523
      %vm635 = vcmp.eq.s32.totalorder %v539, %v523
      %vm636 = vcmp.eq.s32.totalorder %v540, %v523
      %vm637 = vcmp.eq.s32.totalorder %v541, %v523
      %vm638 = vcmp.eq.s32.totalorder %v542, %v523
      %vm639 = vcmp.eq.s32.totalorder %v543, %v523
      %vm640 = vcmp.eq.s32.totalorder %v544, %v523
      %vm641 = vcmp.eq.s32.totalorder %v545, %v523
      %vm642 = vcmp.eq.s32.totalorder %v546, %v523
      %vm643 = vcmp.eq.s32.totalorder %v547, %v523
      %vm644 = vcmp.eq.s32.totalorder %v548, %v523
      %vm645 = vcmp.eq.s32.totalorder %v549, %v523
      %vm646 = vcmp.eq.s32.totalorder %v550, %v523
      %vm647 = vcmp.eq.s32.totalorder %v551, %v523
      %vm648 = vcmp.eq.s32.totalorder %v552, %v523
      %vm649 = vcmp.eq.s32.totalorder %v553, %v523
      %vm650 = vcmp.eq.s32.totalorder %v554, %v523
      %vm651 = vcmp.eq.s32.totalorder %v555, %v523
      %vm652 = vcmp.eq.s32.totalorder %v556, %v523
      %vm653 = vcmp.eq.s32.totalorder %v557, %v523
      %vm654 = vcmp.eq.s32.totalorder %v526, %v524
      %vm655 = vcmp.eq.s32.totalorder %v527, %v524
      %vm656 = vcmp.eq.s32.totalorder %v528, %v524
      %vm657 = vcmp.eq.s32.totalorder %v529, %v524
      %vm658 = vcmp.eq.s32.totalorder %v530, %v524
      %vm659 = vcmp.eq.s32.totalorder %v531, %v524
      %vm660 = vcmp.eq.s32.totalorder %v532, %v524
      %vm661 = vcmp.eq.s32.totalorder %v533, %v524
      %vm662 = vcmp.eq.s32.totalorder %v534, %v524
      %vm663 = vcmp.eq.s32.totalorder %v535, %v524
      %vm664 = vcmp.eq.s32.totalorder %v536, %v524
      %vm665 = vcmp.eq.s32.totalorder %v537, %v524
      %vm666 = vcmp.eq.s32.totalorder %v538, %v524
      %vm667 = vcmp.eq.s32.totalorder %v539, %v524
      %vm668 = vcmp.eq.s32.totalorder %v540, %v524
      %vm669 = vcmp.eq.s32.totalorder %v541, %v524
      %vm670 = vcmp.eq.s32.totalorder %v542, %v524
      %vm671 = vcmp.eq.s32.totalorder %v543, %v524
      %vm672 = vcmp.eq.s32.totalorder %v544, %v524
      %vm673 = vcmp.eq.s32.totalorder %v545, %v524
      %vm674 = vcmp.eq.s32.totalorder %v546, %v524
      %vm675 = vcmp.eq.s32.totalorder %v547, %v524
      %vm676 = vcmp.eq.s32.totalorder %v548, %v524
      %vm677 = vcmp.eq.s32.totalorder %v549, %v524
      %vm678 = vcmp.eq.s32.totalorder %v550, %v524
      %vm679 = vcmp.eq.s32.totalorder %v551, %v524
      %vm680 = vcmp.eq.s32.totalorder %v552, %v524
      %vm681 = vcmp.eq.s32.totalorder %v553, %v524
      %vm682 = vcmp.eq.s32.totalorder %v554, %v524
      %vm683 = vcmp.eq.s32.totalorder %v555, %v524
      %vm684 = vcmp.eq.s32.totalorder %v556, %v524
      %vm685 = vcmp.eq.s32.totalorder %v557, %v524
      %vm686 = vcmp.eq.s32.totalorder %v526, %v525
      %vm687 = vcmp.eq.s32.totalorder %v527, %v525
      %vm688 = vcmp.eq.s32.totalorder %v528, %v525
      %vm689 = vcmp.eq.s32.totalorder %v529, %v525
      %vm690 = vcmp.eq.s32.totalorder %v530, %v525
      %vm691 = vcmp.eq.s32.totalorder %v531, %v525
      %vm692 = vcmp.eq.s32.totalorder %v532, %v525
      %vm693 = vcmp.eq.s32.totalorder %v533, %v525
      %vm694 = vcmp.eq.s32.totalorder %v534, %v525
      %vm695 = vcmp.eq.s32.totalorder %v535, %v525
      %vm696 = vcmp.eq.s32.totalorder %v536, %v525
      %vm697 = vcmp.eq.s32.totalorder %v537, %v525
      %vm698 = vcmp.eq.s32.totalorder %v538, %v525
      %vm699 = vcmp.eq.s32.totalorder %v539, %v525
      %vm700 = vcmp.eq.s32.totalorder %v540, %v525
      %vm701 = vcmp.eq.s32.totalorder %v541, %v525
      %vm702 = vcmp.eq.s32.totalorder %v542, %v525
      %vm703 = vcmp.eq.s32.totalorder %v543, %v525
      %vm704 = vcmp.eq.s32.totalorder %v544, %v525
      %vm705 = vcmp.eq.s32.totalorder %v545, %v525
      %vm706 = vcmp.eq.s32.totalorder %v546, %v525
      %vm707 = vcmp.eq.s32.totalorder %v547, %v525
      %vm708 = vcmp.eq.s32.totalorder %v548, %v525
      %vm709 = vcmp.eq.s32.totalorder %v549, %v525
      %vm710 = vcmp.eq.s32.totalorder %v550, %v525
      %vm711 = vcmp.eq.s32.totalorder %v551, %v525
      %vm712 = vcmp.eq.s32.totalorder %v552, %v525
      %vm713 = vcmp.eq.s32.totalorder %v553, %v525
      %vm714 = vcmp.eq.s32.totalorder %v554, %v525
      %vm715 = vcmp.eq.s32.totalorder %v555, %v525
      %vm716 = vcmp.eq.s32.totalorder %v556, %v525
      %vm717 = vcmp.eq.s32.totalorder %v557, %v525
      %v718 = vmul.f32 %v356, %v356
      %v719 = vmul.f32 %v357, %v357
      %v720 = vmul.f32 %v358, %v358
      %v721 = vmul.f32 %v359, %v359
      %v722 = vmul.f32 %v360, %v360
      %v723 = vmul.f32 %v361, %v361
      %v724 = vmul.f32 %v362, %v362
      %v725 = vmul.f32 %v363, %v363
      %v726 = vmul.f32 %v364, %v364
      %v727 = vmul.f32 %v365, %v365
      %v728 = vmul.f32 %v366, %v366
      %v729 = vmul.f32 %v367, %v367
      %v730 = vmul.f32 %v368, %v368
      %v731 = vmul.f32 %v369, %v369
      %v732 = vmul.f32 %v370, %v370
      %v733 = vmul.f32 %v371, %v371
      %v734 = vmul.f32 %v372, %v372
      %v735 = vmul.f32 %v373, %v373
      %v736 = vmul.f32 %v374, %v374
      %v737 = vmul.f32 %v375, %v375
      %v738 = vmul.f32 %v376, %v376
      %v739 = vmul.f32 %v377, %v377
      %v740 = vmul.f32 %v378, %v378
      %v741 = vmul.f32 %v379, %v379
      %v742 = vmul.f32 %v380, %v380
      %v743 = vmul.f32 %v381, %v381
      %v744 = vmul.f32 %v382, %v382
      %v745 = vmul.f32 %v383, %v383
      %v746 = vmul.f32 %v384, %v384
      %v747 = vmul.f32 %v385, %v385
      %v748 = vmul.f32 %v386, %v386
      %v749 = vmul.f32 %v387, %v387
      %v750 = vmul.f32 %v388, %v388
      %v751 = vmul.f32 %v389, %v389
      %v752 = vmul.f32 %v390, %v390
      %v753 = vmul.f32 %v391, %v391
      %v754 = vmul.f32 %v392, %v392
      %v755 = vmul.f32 %v393, %v393
      %v756 = vmul.f32 %v394, %v394
      %v757 = vmul.f32 %v395, %v395
      %v758 = vmul.f32 %v396, %v396
      %v759 = vmul.f32 %v397, %v397
      %v760 = vmul.f32 %v398, %v398
      %v761 = vmul.f32 %v399, %v399
      %v762 = vmul.f32 %v400, %v400
      %v763 = vmul.f32 %v401, %v401
      %v764 = vmul.f32 %v402, %v402
      %v765 = vmul.f32 %v403, %v403
      %v766 = vmul.f32 %v404, %v404
      %v767 = vmul.f32 %v405, %v405
      %v768 = vmul.f32 %v406, %v406
      %v769 = vmul.f32 %v407, %v407
      %v770 = vmul.f32 %v408, %v408
      %v771 = vmul.f32 %v409, %v409
      %v772 = vmul.f32 %v410, %v410
      %v773 = vmul.f32 %v411, %v411
      %v774 = vmul.f32 %v412, %v412
      %v775 = vmul.f32 %v413, %v413
      %v776 = vmul.f32 %v414, %v414
      %v777 = vmul.f32 %v415, %v415
      %v778 = vmul.f32 %v416, %v416
      %v779 = vmul.f32 %v417, %v417
      %v780 = vmul.f32 %v418, %v418
      %v781 = vmul.f32 %v419, %v419
      %v782 = vmul.f32 %v420, %v420
      %v783 = vmul.f32 %v421, %v421
      %v784 = vmul.f32 %v422, %v422
      %v785 = vmul.f32 %v423, %v423
      %v786 = vmul.f32 %v424, %v424
      %v787 = vmul.f32 %v425, %v425
      %v788 = vmul.f32 %v426, %v426
      %v789 = vmul.f32 %v427, %v427
      %v790 = vmul.f32 %v428, %v428
      %v791 = vmul.f32 %v429, %v429
      %v792 = vmul.f32 %v430, %v430
      %v793 = vmul.f32 %v431, %v431
      %v794 = vmul.f32 %v432, %v432
      %v795 = vmul.f32 %v433, %v433
      %v796 = vmul.f32 %v434, %v434
      %v797 = vmul.f32 %v435, %v435
      %v798 = vmul.f32 %v436, %v436
      %v799 = vmul.f32 %v437, %v437
      %v800 = vmul.f32 %v438, %v438
      %v801 = vmul.f32 %v439, %v439
      %v802 = vmul.f32 %v440, %v440
      %v803 = vmul.f32 %v441, %v441
      %v804 = vmul.f32 %v442, %v442
      %v805 = vmul.f32 %v443, %v443
      %v806 = vmul.f32 %v444, %v444
      %v807 = vmul.f32 %v445, %v445
      %v808 = vmul.f32 %v446, %v446
      %v809 = vmul.f32 %v447, %v447
      %v810 = vmul.f32 %v448, %v448
      %v811 = vmul.f32 %v449, %v449
      %v812 = vmul.f32 %v450, %v450
      %v813 = vmul.f32 %v451, %v451
      %v814 = vmul.f32 %v452, %v452
      %v815 = vmul.f32 %v453, %v453
      %v816 = vmul.f32 %v454, %v454
      %v817 = vmul.f32 %v455, %v455
      %v818 = vmul.f32 %v456, %v456
      %v819 = vmul.f32 %v457, %v457
      %v820 = vmul.f32 %v458, %v458
      %v821 = vmul.f32 %v459, %v459
      %v822 = vmul.f32 %v460, %v460
      %v823 = vmul.f32 %v461, %v461
      %v824 = vmul.f32 %v462, %v462
      %v825 = vmul.f32 %v463, %v463
      %v826 = vmul.f32 %v464, %v464
      %v827 = vmul.f32 %v465, %v465
      %v828 = vmul.f32 %v466, %v466
      %v829 = vmul.f32 %v467, %v467
      %v830 = vmul.f32 %v468, %v468
      %v831 = vmul.f32 %v469, %v469
      %v832 = vmul.f32 %v470, %v470
      %v833 = vmul.f32 %v471, %v471
      %v834 = vmul.f32 %v472, %v472
      %v835 = vmul.f32 %v473, %v473
      %v836 = vmul.f32 %v474, %v474
      %v837 = vmul.f32 %v475, %v475
      %v838 = vmul.f32 %v476, %v476
      %v839 = vmul.f32 %v477, %v477
      %v840 = vmul.f32 %v478, %v478
      %v841 = vmul.f32 %v479, %v479
      %v842 = vmul.f32 %v480, %v480
      %v843 = vmul.f32 %v481, %v481
      %v844 = vmul.f32 %v482, %v482
      %v845 = vmul.f32 %v483, %v483
      %v846 = vmul.f32 %v484, %v484
      %v847 = vmul.f32 %v485, %v485
      %v848 = vmul.f32 %v486, %v486
      %v849 = vmul.f32 %v487, %v487
      %v850 = vmul.f32 %v488, %v488
      %v851 = vmul.f32 %v489, %v489
      %v852 = vmul.f32 %v490, %v490
      %v853 = vmul.f32 %v491, %v491
      %v854 = vmul.f32 %v492, %v492
      %v855 = vmul.f32 %v493, %v493
      %v856 = vmul.f32 %v494, %v494
      %v857 = vmul.f32 %v495, %v495
      %v858 = vmul.f32 %v496, %v496
      %v859 = vmul.f32 %v497, %v497
      %v860 = vmul.f32 %v498, %v498
      %v861 = vmul.f32 %v499, %v499
      %v862 = vmul.f32 %v500, %v500
      %v863 = vmul.f32 %v501, %v501
      %v864 = vmul.f32 %v502, %v502
      %v865 = vmul.f32 %v503, %v503
      %v866 = vmul.f32 %v504, %v504
      %v867 = vmul.f32 %v505, %v505
      %v868 = vmul.f32 %v506, %v506
      %v869 = vmul.f32 %v507, %v507
      %v870 = vmul.f32 %v508, %v508
      %v871 = vmul.f32 %v509, %v509
      %v872 = vmul.f32 %v510, %v510
      %v873 = vmul.f32 %v511, %v511
      %v874 = vmul.f32 %v512, %v512
      %v875 = vmul.f32 %v513, %v513
      %v876 = vmul.f32 %v514, %v514
      %v877 = vmul.f32 %v515, %v515
      %v878 = vld [vmem:[%s316] sm:$0xff]
      %v879 = vld [vmem:[%s316 + $0x8] sm:$0xff]
      %v880 = vld [vmem:[%s316 + $0x10] sm:$0xff]
      %v881 = vld [vmem:[%s316 + $0x18] sm:$0xff]
      %v882 = vld [vmem:[%s316 + $0x20] sm:$0xf]
      %v883 = vsel %vm558, %v356, 0.0
      %v884 = vsel %vm559, %v357, 0.0
      %v885 = vsel %vm560, %v358, 0.0
      %v886 = vsel %vm561, %v359, 0.0
      %v887 = vsel %vm562, %v360, 0.0
      %v888 = vsel %vm563, %v361, 0.0
      %v889 = vsel %vm564, %v362, 0.0
      %v890 = vsel %vm565, %v363, 0.0
      %v891 = vsel %vm566, %v364, 0.0
      %v892 = vsel %vm567, %v365, 0.0
      %v893 = vsel %vm568, %v366, 0.0
      %v894 = vsel %vm569, %v367, 0.0
      %v895 = vsel %vm570, %v368, 0.0
      %v896 = vsel %vm571, %v369, 0.0
      %v897 = vsel %vm572, %v370, 0.0
      %v898 = vsel %vm573, %v371, 0.0
      %v899 = vsel %vm574, %v372, 0.0
      %v900 = vsel %vm575, %v373, 0.0
      %v901 = vsel %vm576, %v374, 0.0
      %v902 = vsel %vm577, %v375, 0.0
      %v903 = vsel %vm578, %v376, 0.0
      %v904 = vsel %vm579, %v377, 0.0
      %v905 = vsel %vm580, %v378, 0.0
      %v906 = vsel %vm581, %v379, 0.0
      %v907 = vsel %vm582, %v380, 0.0
      %v908 = vsel %vm583, %v381, 0.0
      %v909 = vsel %vm584, %v382, 0.0
      %v910 = vsel %vm585, %v383, 0.0
      %v911 = vsel %vm586, %v384, 0.0
      %v912 = vsel %vm587, %v385, 0.0
      %v913 = vsel %vm588, %v386, 0.0
      %v914 = vsel %vm589, %v387, 0.0
      %v915 = vsel %vm590, %v388, 0.0
      %v916 = vsel %vm591, %v389, 0.0
      %v917 = vsel %vm592, %v390, 0.0
      %v918 = vsel %vm593, %v391, 0.0
      %v919 = vsel %vm594, %v392, 0.0
      %v920 = vsel %vm595, %v393, 0.0
      %v921 = vsel %vm596, %v394, 0.0
      %v922 = vsel %vm597, %v395, 0.0
      %v923 = vsel %vm598, %v396, 0.0
      %v924 = vsel %vm599, %v397, 0.0
      %v925 = vsel %vm600, %v398, 0.0
      %v926 = vsel %vm601, %v399, 0.0
      %v927 = vsel %vm602, %v400, 0.0
      %v928 = vsel %vm603, %v401, 0.0
      %v929 = vsel %vm604, %v402, 0.0
      %v930 = vsel %vm605, %v403, 0.0
      %v931 = vsel %vm606, %v404, 0.0
      %v932 = vsel %vm607, %v405, 0.0
      %v933 = vsel %vm608, %v406, 0.0
      %v934 = vsel %vm609, %v407, 0.0
      %v935 = vsel %vm610, %v408, 0.0
      %v936 = vsel %vm611, %v409, 0.0
      %v937 = vsel %vm612, %v410, 0.0
      %v938 = vsel %vm613, %v411, 0.0
      %v939 = vsel %vm614, %v412, 0.0
      %v940 = vsel %vm615, %v413, 0.0
      %v941 = vsel %vm616, %v414, 0.0
      %v942 = vsel %vm617, %v415, 0.0
      %v943 = vsel %vm618, %v416, 0.0
      %v944 = vsel %vm619, %v417, 0.0
      %v945 = vsel %vm620, %v418, 0.0
      %v946 = vsel %vm621, %v419, 0.0
      %v947 = vsel %vm622, %v420, 0.0
      %v948 = vsel %vm623, %v421, 0.0
      %v949 = vsel %vm624, %v422, 0.0
      %v950 = vsel %vm625, %v423, 0.0
      %v951 = vsel %vm626, %v424, 0.0
      %v952 = vsel %vm627, %v425, 0.0
      %v953 = vsel %vm628, %v426, 0.0
      %v954 = vsel %vm629, %v427, 0.0
      %v955 = vsel %vm630, %v428, 0.0
      %v956 = vsel %vm631, %v429, 0.0
      %v957 = vsel %vm632, %v430, 0.0
      %v958 = vsel %vm633, %v431, 0.0
      %v959 = vsel %vm634, %v432, 0.0
      %v960 = vsel %vm635, %v433, 0.0
      %v961 = vsel %vm636, %v434, 0.0
      %v962 = vsel %vm637, %v435, 0.0
      %v963 = vsel %vm638, %v436, 0.0
      %v964 = vsel %vm639, %v437, 0.0
      %v965 = vsel %vm640, %v438, 0.0
      %v966 = vsel %vm641, %v439, 0.0
      %v967 = vsel %vm642, %v440, 0.0
      %v968 = vsel %vm643, %v441, 0.0
      %v969 = vsel %vm644, %v442, 0.0
      %v970 = vsel %vm645, %v443, 0.0
      %v971 = vsel %vm646, %v444, 0.0
      %v972 = vsel %vm647, %v445, 0.0
      %v973 = vsel %vm648, %v446, 0.0
      %v974 = vsel %vm649, %v447, 0.0
      %v975 = vsel %vm650, %v448, 0.0
      %v976 = vsel %vm651, %v449, 0.0
      %v977 = vsel %vm652, %v450, 0.0
      %v978 = vsel %vm653, %v451, 0.0
      %v979 = vsel %vm654, %v452, 0.0
      %v980 = vsel %vm655, %v453, 0.0
      %v981 = vsel %vm656, %v454, 0.0
      %v982 = vsel %vm657, %v455, 0.0
      %v983 = vsel %vm658, %v456, 0.0
      %v984 = vsel %vm659, %v457, 0.0
      %v985 = vsel %vm660, %v458, 0.0
      %v986 = vsel %vm661, %v459, 0.0
      %v987 = vsel %vm662, %v460, 0.0
      %v988 = vsel %vm663, %v461, 0.0
      %v989 = vsel %vm664, %v462, 0.0
      %v990 = vsel %vm665, %v463, 0.0
      %v991 = vsel %vm666, %v464, 0.0
      %v992 = vsel %vm667, %v465, 0.0
      %v993 = vsel %vm668, %v466, 0.0
      %v994 = vsel %vm669, %v467, 0.0
      %v995 = vsel %vm670, %v468, 0.0
      %v996 = vsel %vm671, %v469, 0.0
      %v997 = vsel %vm672, %v470, 0.0
      %v998 = vsel %vm673, %v471, 0.0
      %v999 = vsel %vm674, %v472, 0.0
      %v1000 = vsel %vm675, %v473, 0.0
      %v1001 = vsel %vm676, %v474, 0.0
      %v1002 = vsel %vm677, %v475, 0.0
      %v1003 = vsel %vm678, %v476, 0.0
      %v1004 = vsel %vm679, %v477, 0.0
      %v1005 = vsel %vm680, %v478, 0.0
      %v1006 = vsel %vm681, %v479, 0.0
      %v1007 = vsel %vm682, %v480, 0.0
      %v1008 = vsel %vm683, %v481, 0.0
      %v1009 = vsel %vm684, %v482, 0.0
      %v1010 = vsel %vm685, %v483, 0.0
      %v1011 = vsel %vm686, %v484, 0.0
      %v1012 = vsel %vm687, %v485, 0.0
      %v1013 = vsel %vm688, %v486, 0.0
      %v1014 = vsel %vm689, %v487, 0.0
      %v1015 = vsel %vm690, %v488, 0.0
      %v1016 = vsel %vm691, %v489, 0.0
      %v1017 = vsel %vm692, %v490, 0.0
      %v1018 = vsel %vm693, %v491, 0.0
      %v1019 = vsel %vm694, %v492, 0.0
      %v1020 = vsel %vm695, %v493, 0.0
      %v1021 = vsel %vm696, %v494, 0.0
      %v1022 = vsel %vm697, %v495, 0.0
      %v1023 = vsel %vm698, %v496, 0.0
      %v1024 = vsel %vm699, %v497, 0.0
      %v1025 = vsel %vm700, %v498, 0.0
      %v1026 = vsel %vm701, %v499, 0.0
      %v1027 = vsel %vm702, %v500, 0.0
      %v1028 = vsel %vm703, %v501, 0.0
      %v1029 = vsel %vm704, %v502, 0.0
      %v1030 = vsel %vm705, %v503, 0.0
      %v1031 = vsel %vm706, %v504, 0.0
      %v1032 = vsel %vm707, %v505, 0.0
      %v1033 = vsel %vm708, %v506, 0.0
      %v1034 = vsel %vm709, %v507, 0.0
      %v1035 = vsel %vm710, %v508, 0.0
      %v1036 = vsel %vm711, %v509, 0.0
      %v1037 = vsel %vm712, %v510, 0.0
      %v1038 = vsel %vm713, %v511, 0.0
      %v1039 = vsel %vm714, %v512, 0.0
      %v1040 = vsel %vm715, %v513, 0.0
      %v1041 = vsel %vm716, %v514, 0.0
      %v1042 = vsel %vm717, %v515, 0.0
      %v1043 = vadd.f32 %v883, %v884
      %v1044 = vadd.f32 %v1043, %v885
      %v1045 = vadd.f32 %v1044, %v886
      %v1046 = vadd.f32 %v1045, %v887
      %v1047 = vadd.f32 %v1046, %v888
      %v1048 = vadd.f32 %v1047, %v889
      %v1049 = vadd.f32 %v1048, %v890
      %v1050 = vadd.f32 %v1049, %v891
      %v1051 = vadd.f32 %v1050, %v892
      %v1052 = vadd.f32 %v1051, %v893
      %v1053 = vadd.f32 %v1052, %v894
      %v1054 = vadd.f32 %v1053, %v895
      %v1055 = vadd.f32 %v1054, %v896
      %v1056 = vadd.f32 %v1055, %v897
      %v1057 = vadd.f32 %v1056, %v898
      %v1058 = vadd.f32 %v1057, %v899
      %v1059 = vadd.f32 %v1058, %v900
      %v1060 = vadd.f32 %v1059, %v901
      %v1061 = vadd.f32 %v1060, %v902
      %v1062 = vadd.f32 %v1061, %v903
      %v1063 = vadd.f32 %v1062, %v904
      %v1064 = vadd.f32 %v1063, %v905
      %v1065 = vadd.f32 %v1064, %v906
      %v1066 = vadd.f32 %v1065, %v907
      %v1067 = vadd.f32 %v1066, %v908
      %v1068 = vadd.f32 %v1067, %v909
      %v1069 = vadd.f32 %v1068, %v910
      %v1070 = vadd.f32 %v1069, %v911
      %v1071 = vadd.f32 %v1070, %v912
      %v1072 = vadd.f32 %v1071, %v913
      %v1073 = vadd.f32 %v1072, %v914
      %1074 = vadd.xlane.f32.xlu0 %v1073
      %v1075 = vpop.xlane.xlu0 %1074
      %v1076 = vadd.f32 %v915, %v916
      %v1077 = vadd.f32 %v1076, %v917
      %v1078 = vadd.f32 %v1077, %v918
      %v1079 = vadd.f32 %v1078, %v919
      %v1080 = vadd.f32 %v1079, %v920
      %v1081 = vadd.f32 %v1080, %v921
      %v1082 = vadd.f32 %v1081, %v922
      %v1083 = vadd.f32 %v1082, %v923
      %v1084 = vadd.f32 %v1083, %v924
      %v1085 = vadd.f32 %v1084, %v925
      %v1086 = vadd.f32 %v1085, %v926
      %v1087 = vadd.f32 %v1086, %v927
      %v1088 = vadd.f32 %v1087, %v928
      %v1089 = vadd.f32 %v1088, %v929
      %v1090 = vadd.f32 %v1089, %v930
      %v1091 = vadd.f32 %v1090, %v931
      %v1092 = vadd.f32 %v1091, %v932
      %v1093 = vadd.f32 %v1092, %v933
      %v1094 = vadd.f32 %v1093, %v934
      %v1095 = vadd.f32 %v1094, %v935
      %v1096 = vadd.f32 %v1095, %v936
      %v1097 = vadd.f32 %v1096, %v937
      %v1098 = vadd.f32 %v1097, %v938
      %v1099 = vadd.f32 %v1098, %v939
      %v1100 = vadd.f32 %v1099, %v940
      %v1101 = vadd.f32 %v1100, %v941
      %v1102 = vadd.f32 %v1101, %v942
      %v1103 = vadd.f32 %v1102, %v943
      %v1104 = vadd.f32 %v1103, %v944
      %v1105 = vadd.f32 %v1104, %v945
      %v1106 = vadd.f32 %v1105, %v946
      %1107 = vadd.xlane.f32.xlu0 %v1106
      %v1108 = vpop.xlane.xlu0 %1107
      %v1109 = vadd.f32 %v947, %v948
      %v1110 = vadd.f32 %v1109, %v949
      %v1111 = vadd.f32 %v1110, %v950
      %v1112 = vadd.f32 %v1111, %v951
      %v1113 = vadd.f32 %v1112, %v952
      %v1114 = vadd.f32 %v1113, %v953
      %v1115 = vadd.f32 %v1114, %v954
      %v1116 = vadd.f32 %v1115, %v955
      %v1117 = vadd.f32 %v1116, %v956
      %v1118 = vadd.f32 %v1117, %v957
      %v1119 = vadd.f32 %v1118, %v958
      %v1120 = vadd.f32 %v1119, %v959
      %v1121 = vadd.f32 %v1120, %v960
      %v1122 = vadd.f32 %v1121, %v961
      %v1123 = vadd.f32 %v1122, %v962
      %v1124 = vadd.f32 %v1123, %v963
      %v1125 = vadd.f32 %v1124, %v964
      %v1126 = vadd.f32 %v1125, %v965
      %v1127 = vadd.f32 %v1126, %v966
      %v1128 = vadd.f32 %v1127, %v967
      %v1129 = vadd.f32 %v1128, %v968
      %v1130 = vadd.f32 %v1129, %v969
      %v1131 = vadd.f32 %v1130, %v970
      %v1132 = vadd.f32 %v1131, %v971
      %v1133 = vadd.f32 %v1132, %v972
      %v1134 = vadd.f32 %v1133, %v973
      %v1135 = vadd.f32 %v1134, %v974
      %v1136 = vadd.f32 %v1135, %v975
      %v1137 = vadd.f32 %v1136, %v976
      %v1138 = vadd.f32 %v1137, %v977
      %v1139 = vadd.f32 %v1138, %v978
      %1140 = vadd.xlane.f32.xlu0 %v1139
      %v1141 = vpop.xlane.xlu0 %1140
      %v1142 = vadd.f32 %v979, %v980
      %v1143 = vadd.f32 %v1142, %v981
      %v1144 = vadd.f32 %v1143, %v982
      %v1145 = vadd.f32 %v1144, %v983
      %v1146 = vadd.f32 %v1145, %v984
      %v1147 = vadd.f32 %v1146, %v985
      %v1148 = vadd.f32 %v1147, %v986
      %v1149 = vadd.f32 %v1148, %v987
      %v1150 = vadd.f32 %v1149, %v988
      %v1151 = vadd.f32 %v1150, %v989
      %v1152 = vadd.f32 %v1151, %v990
      %v1153 = vadd.f32 %v1152, %v991
      %v1154 = vadd.f32 %v1153, %v992
      %v1155 = vadd.f32 %v1154, %v993
      %v1156 = vadd.f32 %v1155, %v994
      %v1157 = vadd.f32 %v1156, %v995
      %v1158 = vadd.f32 %v1157, %v996
      %v1159 = vadd.f32 %v1158, %v997
      %v1160 = vadd.f32 %v1159, %v998
      %v1161 = vadd.f32 %v1160, %v999
      %v1162 = vadd.f32 %v1161, %v1000
      %v1163 = vadd.f32 %v1162, %v1001
      %v1164 = vadd.f32 %v1163, %v1002
      %v1165 = vadd.f32 %v1164, %v1003
      %v1166 = vadd.f32 %v1165, %v1004
      %v1167 = vadd.f32 %v1166, %v1005
      %v1168 = vadd.f32 %v1167, %v1006
      %v1169 = vadd.f32 %v1168, %v1007
      %v1170 = vadd.f32 %v1169, %v1008
      %v1171 = vadd.f32 %v1170, %v1009
      %v1172 = vadd.f32 %v1171, %v1010
      %1173 = vadd.xlane.f32.xlu0 %v1172
      %v1174 = vpop.xlane.xlu0 %1173
      %vm1175 = vcmask 1043456
      %v1176 = vsel %vm1175, %v1011, 0.0
      %v1177 = vsel %vm1175, %v1012, 0.0
      %v1178 = vadd.f32 %v1176, %v1177
      %v1179 = vsel %vm1175, %v1013, 0.0
      %v1180 = vadd.f32 %v1178, %v1179
      %v1181 = vsel %vm1175, %v1014, 0.0
      %v1182 = vadd.f32 %v1180, %v1181
      %v1183 = vsel %vm1175, %v1015, 0.0
      %v1184 = vadd.f32 %v1182, %v1183
      %v1185 = vsel %vm1175, %v1016, 0.0
      %v1186 = vadd.f32 %v1184, %v1185
      %v1187 = vsel %vm1175, %v1017, 0.0
      %v1188 = vadd.f32 %v1186, %v1187
      %v1189 = vsel %vm1175, %v1018, 0.0
      %v1190 = vadd.f32 %v1188, %v1189
      %v1191 = vsel %vm1175, %v1019, 0.0
      %v1192 = vadd.f32 %v1190, %v1191
      %v1193 = vsel %vm1175, %v1020, 0.0
      %v1194 = vadd.f32 %v1192, %v1193
      %v1195 = vsel %vm1175, %v1021, 0.0
      %v1196 = vadd.f32 %v1194, %v1195
      %v1197 = vsel %vm1175, %v1022, 0.0
      %v1198 = vadd.f32 %v1196, %v1197
      %v1199 = vsel %vm1175, %v1023, 0.0
      %v1200 = vadd.f32 %v1198, %v1199
      %v1201 = vsel %vm1175, %v1024, 0.0
      %v1202 = vadd.f32 %v1200, %v1201
      %v1203 = vsel %vm1175, %v1025, 0.0
      %v1204 = vadd.f32 %v1202, %v1203
      %v1205 = vsel %vm1175, %v1026, 0.0
      %v1206 = vadd.f32 %v1204, %v1205
      %v1207 = vsel %vm1175, %v1027, 0.0
      %v1208 = vadd.f32 %v1206, %v1207
      %v1209 = vsel %vm1175, %v1028, 0.0
      %v1210 = vadd.f32 %v1208, %v1209
      %v1211 = vsel %vm1175, %v1029, 0.0
      %v1212 = vadd.f32 %v1210, %v1211
      %v1213 = vsel %vm1175, %v1030, 0.0
      %v1214 = vadd.f32 %v1212, %v1213
      %v1215 = vsel %vm1175, %v1031, 0.0
      %v1216 = vadd.f32 %v1214, %v1215
      %v1217 = vsel %vm1175, %v1032, 0.0
      %v1218 = vadd.f32 %v1216, %v1217
      %v1219 = vsel %vm1175, %v1033, 0.0
      %v1220 = vadd.f32 %v1218, %v1219
      %v1221 = vsel %vm1175, %v1034, 0.0
      %v1222 = vadd.f32 %v1220, %v1221
      %v1223 = vsel %vm1175, %v1035, 0.0
      %v1224 = vadd.f32 %v1222, %v1223
      %v1225 = vsel %vm1175, %v1036, 0.0
      %v1226 = vadd.f32 %v1224, %v1225
      %v1227 = vsel %vm1175, %v1037, 0.0
      %v1228 = vadd.f32 %v1226, %v1227
      %v1229 = vsel %vm1175, %v1038, 0.0
      %v1230 = vadd.f32 %v1228, %v1229
      %v1231 = vsel %vm1175, %v1039, 0.0
      %v1232 = vadd.f32 %v1230, %v1231
      %v1233 = vsel %vm1175, %v1040, 0.0
      %v1234 = vadd.f32 %v1232, %v1233
      %v1235 = vsel %vm1175, %v1041, 0.0
      %v1236 = vadd.f32 %v1234, %v1235
      %v1237 = vsel %vm1175, %v1042, 0.0
      %v1238 = vadd.f32 %v1236, %v1237
      %1239 = vadd.xlane.f32.xlu0 %v1238
      %v1240 = vpop.xlane.xlu0 %1239
      %v1241 = vadd.f32 %v878, %v1075
      %v1242 = vadd.f32 %v879, %v1108
      %v1243 = vadd.f32 %v880, %v1141
      %v1244 = vadd.f32 %v881, %v1174
      %v1245 = vadd.f32 %v882, %v1240
      %vm1246 = vcmask 7168
      %1247 = vst.msk [vmem:[%s316] sm:$0xff] %vm1246, %v1241
      %1248 = vst.msk [vmem:[%s316 + $0x8] sm:$0xff] %vm1246, %v1242
      %1249 = vst.msk [vmem:[%s316 + $0x10] sm:$0xff] %vm1246, %v1243
      %1250 = vst.msk [vmem:[%s316 + $0x18] sm:$0xff] %vm1246, %v1244
      %vm1251 = vcmask 3072
      %1252 = vst.msk [vmem:[%s316 + $0x20] sm:$0xf] %vm1251, %v1245
      %v1253 = vld [vmem:[%s325] sm:$0xff]
      %v1254 = vld [vmem:[%s325 + $0x8] sm:$0xff]
      %v1255 = vld [vmem:[%s325 + $0x10] sm:$0xff]
      %v1256 = vld [vmem:[%s325 + $0x18] sm:$0xff]
      %v1257 = vld [vmem:[%s325 + $0x20] sm:$0xf]
      %v1258 = vadd.f32 %v718, %v719
      %v1259 = vadd.f32 %v1258, %v720
      %v1260 = vadd.f32 %v1259, %v721
      %v1261 = vadd.f32 %v1260, %v722
      %v1262 = vadd.f32 %v1261, %v723
      %v1263 = vadd.f32 %v1262, %v724
      %v1264 = vadd.f32 %v1263, %v725
      %v1265 = vadd.f32 %v1264, %v726
      %v1266 = vadd.f32 %v1265, %v727
      %v1267 = vadd.f32 %v1266, %v728
      %v1268 = vadd.f32 %v1267, %v729
      %v1269 = vadd.f32 %v1268, %v730
      %v1270 = vadd.f32 %v1269, %v731
      %v1271 = vadd.f32 %v1270, %v732
      %v1272 = vadd.f32 %v1271, %v733
      %v1273 = vadd.f32 %v1272, %v734
      %v1274 = vadd.f32 %v1273, %v735
      %v1275 = vadd.f32 %v1274, %v736
      %v1276 = vadd.f32 %v1275, %v737
      %v1277 = vadd.f32 %v1276, %v738
      %v1278 = vadd.f32 %v1277, %v739
      %v1279 = vadd.f32 %v1278, %v740
      %v1280 = vadd.f32 %v1279, %v741
      %v1281 = vadd.f32 %v1280, %v742
      %v1282 = vadd.f32 %v1281, %v743
      %v1283 = vadd.f32 %v1282, %v744
      %v1284 = vadd.f32 %v1283, %v745
      %v1285 = vadd.f32 %v1284, %v746
      %v1286 = vadd.f32 %v1285, %v747
      %v1287 = vadd.f32 %v1286, %v748
      %v1288 = vadd.f32 %v1287, %v749
      %1289 = vadd.xlane.f32.xlu0 %v1288
      %v1290 = vpop.xlane.xlu0 %1289
      %v1291 = vadd.f32 %v750, %v751
      %v1292 = vadd.f32 %v1291, %v752
      %v1293 = vadd.f32 %v1292, %v753
      %v1294 = vadd.f32 %v1293, %v754
      %v1295 = vadd.f32 %v1294, %v755
      %v1296 = vadd.f32 %v1295, %v756
      %v1297 = vadd.f32 %v1296, %v757
      %v1298 = vadd.f32 %v1297, %v758
      %v1299 = vadd.f32 %v1298, %v759
      %v1300 = vadd.f32 %v1299, %v760
      %v1301 = vadd.f32 %v1300, %v761
      %v1302 = vadd.f32 %v1301, %v762
      %v1303 = vadd.f32 %v1302, %v763
      %v1304 = vadd.f32 %v1303, %v764
      %v1305 = vadd.f32 %v1304, %v765
      %v1306 = vadd.f32 %v1305, %v766
      %v1307 = vadd.f32 %v1306, %v767
      %v1308 = vadd.f32 %v1307, %v768
      %v1309 = vadd.f32 %v1308, %v769
      %v1310 = vadd.f32 %v1309, %v770
      %v1311 = vadd.f32 %v1310, %v771
      %v1312 = vadd.f32 %v1311, %v772
      %v1313 = vadd.f32 %v1312, %v773
      %v1314 = vadd.f32 %v1313, %v774
      %v1315 = vadd.f32 %v1314, %v775
      %v1316 = vadd.f32 %v1315, %v776
      %v1317 = vadd.f32 %v1316, %v777
      %v1318 = vadd.f32 %v1317, %v778
      %v1319 = vadd.f32 %v1318, %v779
      %v1320 = vadd.f32 %v1319, %v780
      %v1321 = vadd.f32 %v1320, %v781
      %1322 = vadd.xlane.f32.xlu0 %v1321
      %v1323 = vpop.xlane.xlu0 %1322
      %v1324 = vadd.f32 %v782, %v783
      %v1325 = vadd.f32 %v1324, %v784
      %v1326 = vadd.f32 %v1325, %v785
      %v1327 = vadd.f32 %v1326, %v786
      %v1328 = vadd.f32 %v1327, %v787
      %v1329 = vadd.f32 %v1328, %v788
      %v1330 = vadd.f32 %v1329, %v789
      %v1331 = vadd.f32 %v1330, %v790
      %v1332 = vadd.f32 %v1331, %v791
      %v1333 = vadd.f32 %v1332, %v792
      %v1334 = vadd.f32 %v1333, %v793
      %v1335 = vadd.f32 %v1334, %v794
      %v1336 = vadd.f32 %v1335, %v795
      %v1337 = vadd.f32 %v1336, %v796
      %v1338 = vadd.f32 %v1337, %v797
      %v1339 = vadd.f32 %v1338, %v798
      %v1340 = vadd.f32 %v1339, %v799
      %v1341 = vadd.f32 %v1340, %v800
      %v1342 = vadd.f32 %v1341, %v801
      %v1343 = vadd.f32 %v1342, %v802
      %v1344 = vadd.f32 %v1343, %v803
      %v1345 = vadd.f32 %v1344, %v804
      %v1346 = vadd.f32 %v1345, %v805
      %v1347 = vadd.f32 %v1346, %v806
      %v1348 = vadd.f32 %v1347, %v807
      %v1349 = vadd.f32 %v1348, %v808
      %v1350 = vadd.f32 %v1349, %v809
      %v1351 = vadd.f32 %v1350, %v810
      %v1352 = vadd.f32 %v1351, %v811
      %v1353 = vadd.f32 %v1352, %v812
      %v1354 = vadd.f32 %v1353, %v813
      %1355 = vadd.xlane.f32.xlu0 %v1354
      %v1356 = vpop.xlane.xlu0 %1355
      %v1357 = vadd.f32 %v814, %v815
      %v1358 = vadd.f32 %v1357, %v816
      %v1359 = vadd.f32 %v1358, %v817
      %v1360 = vadd.f32 %v1359, %v818
      %v1361 = vadd.f32 %v1360, %v819
      %v1362 = vadd.f32 %v1361, %v820
      %v1363 = vadd.f32 %v1362, %v821
      %v1364 = vadd.f32 %v1363, %v822
      %v1365 = vadd.f32 %v1364, %v823
      %v1366 = vadd.f32 %v1365, %v824
      %v1367 = vadd.f32 %v1366, %v825
      %v1368 = vadd.f32 %v1367, %v826
      %v1369 = vadd.f32 %v1368, %v827
      %v1370 = vadd.f32 %v1369, %v828
      %v1371 = vadd.f32 %v1370, %v829
      %v1372 = vadd.f32 %v1371, %v830
      %v1373 = vadd.f32 %v1372, %v831
      %v1374 = vadd.f32 %v1373, %v832
      %v1375 = vadd.f32 %v1374, %v833
      %v1376 = vadd.f32 %v1375, %v834
      %v1377 = vadd.f32 %v1376, %v835
      %v1378 = vadd.f32 %v1377, %v836
      %v1379 = vadd.f32 %v1378, %v837
      %v1380 = vadd.f32 %v1379, %v838
      %v1381 = vadd.f32 %v1380, %v839
      %v1382 = vadd.f32 %v1381, %v840
      %v1383 = vadd.f32 %v1382, %v841
      %v1384 = vadd.f32 %v1383, %v842
      %v1385 = vadd.f32 %v1384, %v843
      %v1386 = vadd.f32 %v1385, %v844
      %v1387 = vadd.f32 %v1386, %v845
      %1388 = vadd.xlane.f32.xlu0 %v1387
      %v1389 = vpop.xlane.xlu0 %1388
      %v1390 = vsel %vm1175, %v846, 0.0
      %v1391 = vsel %vm1175, %v847, 0.0
      %v1392 = vadd.f32 %v1390, %v1391
      %v1393 = vsel %vm1175, %v848, 0.0
      %v1394 = vadd.f32 %v1392, %v1393
      %v1395 = vsel %vm1175, %v849, 0.0
      %v1396 = vadd.f32 %v1394, %v1395
      %v1397 = vsel %vm1175, %v850, 0.0
      %v1398 = vadd.f32 %v1396, %v1397
      %v1399 = vsel %vm1175, %v851, 0.0
      %v1400 = vadd.f32 %v1398, %v1399
      %v1401 = vsel %vm1175, %v852, 0.0
      %v1402 = vadd.f32 %v1400, %v1401
      %v1403 = vsel %vm1175, %v853, 0.0
      %v1404 = vadd.f32 %v1402, %v1403
      %v1405 = vsel %vm1175, %v854, 0.0
      %v1406 = vadd.f32 %v1404, %v1405
      %v1407 = vsel %vm1175, %v855, 0.0
      %v1408 = vadd.f32 %v1406, %v1407
      %v1409 = vsel %vm1175, %v856, 0.0
      %v1410 = vadd.f32 %v1408, %v1409
      %v1411 = vsel %vm1175, %v857, 0.0
      %v1412 = vadd.f32 %v1410, %v1411
      %v1413 = vsel %vm1175, %v858, 0.0
      %v1414 = vadd.f32 %v1412, %v1413
      %v1415 = vsel %vm1175, %v859, 0.0
      %v1416 = vadd.f32 %v1414, %v1415
      %v1417 = vsel %vm1175, %v860, 0.0
      %v1418 = vadd.f32 %v1416, %v1417
      %v1419 = vsel %vm1175, %v861, 0.0
      %v1420 = vadd.f32 %v1418, %v1419
      %v1421 = vsel %vm1175, %v862, 0.0
      %v1422 = vadd.f32 %v1420, %v1421
      %v1423 = vsel %vm1175, %v863, 0.0
      %v1424 = vadd.f32 %v1422, %v1423
      %v1425 = vsel %vm1175, %v864, 0.0
      %v1426 = vadd.f32 %v1424, %v1425
      %v1427 = vsel %vm1175, %v865, 0.0
      %v1428 = vadd.f32 %v1426, %v1427
      %v1429 = vsel %vm1175, %v866, 0.0
      %v1430 = vadd.f32 %v1428, %v1429
      %v1431 = vsel %vm1175, %v867, 0.0
      %v1432 = vadd.f32 %v1430, %v1431
      %v1433 = vsel %vm1175, %v868, 0.0
      %v1434 = vadd.f32 %v1432, %v1433
      %v1435 = vsel %vm1175, %v869, 0.0
      %v1436 = vadd.f32 %v1434, %v1435
      %v1437 = vsel %vm1175, %v870, 0.0
      %v1438 = vadd.f32 %v1436, %v1437
      %v1439 = vsel %vm1175, %v871, 0.0
      %v1440 = vadd.f32 %v1438, %v1439
      %v1441 = vsel %vm1175, %v872, 0.0
      %v1442 = vadd.f32 %v1440, %v1441
      %v1443 = vsel %vm1175, %v873, 0.0
      %v1444 = vadd.f32 %v1442, %v1443
      %v1445 = vsel %vm1175, %v874, 0.0
      %v1446 = vadd.f32 %v1444, %v1445
      %v1447 = vsel %vm1175, %v875, 0.0
      %v1448 = vadd.f32 %v1446, %v1447
      %v1449 = vsel %vm1175, %v876, 0.0
      %v1450 = vadd.f32 %v1448, %v1449
      %v1451 = vsel %vm1175, %v877, 0.0
      %v1452 = vadd.f32 %v1450, %v1451
      %1453 = vadd.xlane.f32.xlu0 %v1452
      %v1454 = vpop.xlane.xlu0 %1453
      %v1455 = vadd.f32 %v1253, %v1290
      %v1456 = vadd.f32 %v1254, %v1323
      %v1457 = vadd.f32 %v1255, %v1356
      %v1458 = vadd.f32 %v1256, %v1389
      %v1459 = vadd.f32 %v1257, %v1454
      %1460 = vst.msk [vmem:[%s325] sm:$0xff] %vm1246, %v1455
      %1461 = vst.msk [vmem:[%s325 + $0x8] sm:$0xff] %vm1246, %v1456
      %1462 = vst.msk [vmem:[%s325 + $0x10] sm:$0xff] %vm1246, %v1457
      %1463 = vst.msk [vmem:[%s325 + $0x18] sm:$0xff] %vm1246, %v1458
      %1464 = vst.msk [vmem:[%s325 + $0x20] sm:$0xf] %vm1251, %v1459
      %v1465 = vld [vmem:[%s334] sm:$0xff]
      %v1466 = vld [vmem:[%s334 + $0x8] sm:$0xff]
      %v1467 = vld [vmem:[%s334 + $0x10] sm:$0xff]
      %v1468 = vld [vmem:[%s334 + $0x18] sm:$0xff]
      %v1469 = vld [vmem:[%s334 + $0x20] sm:$0xf]
      %v1470 = vsel %vm558, 1, 0
      %v1471 = vsel %vm559, 1, 0
      %v1472 = vsel %vm560, 1, 0
      %v1473 = vsel %vm561, 1, 0
      %v1474 = vsel %vm562, 1, 0
      %v1475 = vsel %vm563, 1, 0
      %v1476 = vsel %vm564, 1, 0
      %v1477 = vsel %vm565, 1, 0
      %v1478 = vsel %vm566, 1, 0
      %v1479 = vsel %vm567, 1, 0
      %v1480 = vsel %vm568, 1, 0
      %v1481 = vsel %vm569, 1, 0
      %v1482 = vsel %vm570, 1, 0
      %v1483 = vsel %vm571, 1, 0
      %v1484 = vsel %vm572, 1, 0
      %v1485 = vsel %vm573, 1, 0
      %v1486 = vsel %vm574, 1, 0
      %v1487 = vsel %vm575, 1, 0
      %v1488 = vsel %vm576, 1, 0
      %v1489 = vsel %vm577, 1, 0
      %v1490 = vsel %vm578, 1, 0
      %v1491 = vsel %vm579, 1, 0
      %v1492 = vsel %vm580, 1, 0
      %v1493 = vsel %vm581, 1, 0
      %v1494 = vsel %vm582, 1, 0
      %v1495 = vsel %vm583, 1, 0
      %v1496 = vsel %vm584, 1, 0
      %v1497 = vsel %vm585, 1, 0
      %v1498 = vsel %vm586, 1, 0
      %v1499 = vsel %vm587, 1, 0
      %v1500 = vsel %vm588, 1, 0
      %v1501 = vsel %vm589, 1, 0
      %v1502 = vsel %vm590, 1, 0
      %v1503 = vsel %vm591, 1, 0
      %v1504 = vsel %vm592, 1, 0
      %v1505 = vsel %vm593, 1, 0
      %v1506 = vsel %vm594, 1, 0
      %v1507 = vsel %vm595, 1, 0
      %v1508 = vsel %vm596, 1, 0
      %v1509 = vsel %vm597, 1, 0
      %v1510 = vsel %vm598, 1, 0
      %v1511 = vsel %vm599, 1, 0
      %v1512 = vsel %vm600, 1, 0
      %v1513 = vsel %vm601, 1, 0
      %v1514 = vsel %vm602, 1, 0
      %v1515 = vsel %vm603, 1, 0
      %v1516 = vsel %vm604, 1, 0
      %v1517 = vsel %vm605, 1, 0
      %v1518 = vsel %vm606, 1, 0
      %v1519 = vsel %vm607, 1, 0
      %v1520 = vsel %vm608, 1, 0
      %v1521 = vsel %vm609, 1, 0
      %v1522 = vsel %vm610, 1, 0
      %v1523 = vsel %vm611, 1, 0
      %v1524 = vsel %vm612, 1, 0
      %v1525 = vsel %vm613, 1, 0
      %v1526 = vsel %vm614, 1, 0
      %v1527 = vsel %vm615, 1, 0
      %v1528 = vsel %vm616, 1, 0
      %v1529 = vsel %vm617, 1, 0
      %v1530 = vsel %vm618, 1, 0
      %v1531 = vsel %vm619, 1, 0
      %v1532 = vsel %vm620, 1, 0
      %v1533 = vsel %vm621, 1, 0
      %v1534 = vsel %vm622, 1, 0
      %v1535 = vsel %vm623, 1, 0
      %v1536 = vsel %vm624, 1, 0
      %v1537 = vsel %vm625, 1, 0
      %v1538 = vsel %vm626, 1, 0
      %v1539 = vsel %vm627, 1, 0
      %v1540 = vsel %vm628, 1, 0
      %v1541 = vsel %vm629, 1, 0
      %v1542 = vsel %vm630, 1, 0
      %v1543 = vsel %vm631, 1, 0
      %v1544 = vsel %vm632, 1, 0
      %v1545 = vsel %vm633, 1, 0
      %v1546 = vsel %vm634, 1, 0
      %v1547 = vsel %vm635, 1, 0
      %v1548 = vsel %vm636, 1, 0
      %v1549 = vsel %vm637, 1, 0
      %v1550 = vsel %vm638, 1, 0
      %v1551 = vsel %vm639, 1, 0
      %v1552 = vsel %vm640, 1, 0
      %v1553 = vsel %vm641, 1, 0
      %v1554 = vsel %vm642, 1, 0
      %v1555 = vsel %vm643, 1, 0
      %v1556 = vsel %vm644, 1, 0
      %v1557 = vsel %vm645, 1, 0
      %v1558 = vsel %vm646, 1, 0
      %v1559 = vsel %vm647, 1, 0
      %v1560 = vsel %vm648, 1, 0
      %v1561 = vsel %vm649, 1, 0
      %v1562 = vsel %vm650, 1, 0
      %v1563 = vsel %vm651, 1, 0
      %v1564 = vsel %vm652, 1, 0
      %v1565 = vsel %vm653, 1, 0
      %v1566 = vsel %vm654, 1, 0
      %v1567 = vsel %vm655, 1, 0
      %v1568 = vsel %vm656, 1, 0
      %v1569 = vsel %vm657, 1, 0
      %v1570 = vsel %vm658, 1, 0
      %v1571 = vsel %vm659, 1, 0
      %v1572 = vsel %vm660, 1, 0
      %v1573 = vsel %vm661, 1, 0
      %v1574 = vsel %vm662, 1, 0
      %v1575 = vsel %vm663, 1, 0
      %v1576 = vsel %vm664, 1, 0
      %v1577 = vsel %vm665, 1, 0
      %v1578 = vsel %vm666, 1, 0
      %v1579 = vsel %vm667, 1, 0
      %v1580 = vsel %vm668, 1, 0
      %v1581 = vsel %vm669, 1, 0
      %v1582 = vsel %vm670, 1, 0
      %v1583 = vsel %vm671, 1, 0
      %v1584 = vsel %vm672, 1, 0
      %v1585 = vsel %vm673, 1, 0
      %v1586 = vsel %vm674, 1, 0
      %v1587 = vsel %vm675, 1, 0
      %v1588 = vsel %vm676, 1, 0
      %v1589 = vsel %vm677, 1, 0
      %v1590 = vsel %vm678, 1, 0
      %v1591 = vsel %vm679, 1, 0
      %v1592 = vsel %vm680, 1, 0
      %v1593 = vsel %vm681, 1, 0
      %v1594 = vsel %vm682, 1, 0
      %v1595 = vsel %vm683, 1, 0
      %v1596 = vsel %vm684, 1, 0
      %v1597 = vsel %vm685, 1, 0
      %v1598 = vsel %vm686, 1, 0
      %v1599 = vsel %vm687, 1, 0
      %v1600 = vsel %vm688, 1, 0
      %v1601 = vsel %vm689, 1, 0
      %v1602 = vsel %vm690, 1, 0
      %v1603 = vsel %vm691, 1, 0
      %v1604 = vsel %vm692, 1, 0
      %v1605 = vsel %vm693, 1, 0
      %v1606 = vsel %vm694, 1, 0
      %v1607 = vsel %vm695, 1, 0
      %v1608 = vsel %vm696, 1, 0
      %v1609 = vsel %vm697, 1, 0
      %v1610 = vsel %vm698, 1, 0
      %v1611 = vsel %vm699, 1, 0
      %v1612 = vsel %vm700, 1, 0
      %v1613 = vsel %vm701, 1, 0
      %v1614 = vsel %vm702, 1, 0
      %v1615 = vsel %vm703, 1, 0
      %v1616 = vsel %vm704, 1, 0
      %v1617 = vsel %vm705, 1, 0
      %v1618 = vsel %vm706, 1, 0
      %v1619 = vsel %vm707, 1, 0
      %v1620 = vsel %vm708, 1, 0
      %v1621 = vsel %vm709, 1, 0
      %v1622 = vsel %vm710, 1, 0
      %v1623 = vsel %vm711, 1, 0
      %v1624 = vsel %vm712, 1, 0
      %v1625 = vsel %vm713, 1, 0
      %v1626 = vsel %vm714, 1, 0
      %v1627 = vsel %vm715, 1, 0
      %v1628 = vsel %vm716, 1, 0
      %v1629 = vsel %vm717, 1, 0
      %v1630 = vcvt.s32.f32 %v1470
      %v1631 = vcvt.s32.f32 %v1471
      %v1632 = vcvt.s32.f32 %v1472
      %v1633 = vcvt.s32.f32 %v1473
      %v1634 = vcvt.s32.f32 %v1474
      %v1635 = vcvt.s32.f32 %v1475
      %v1636 = vcvt.s32.f32 %v1476
      %v1637 = vcvt.s32.f32 %v1477
      %v1638 = vcvt.s32.f32 %v1478
      %v1639 = vcvt.s32.f32 %v1479
      %v1640 = vcvt.s32.f32 %v1480
      %v1641 = vcvt.s32.f32 %v1481
      %v1642 = vcvt.s32.f32 %v1482
      %v1643 = vcvt.s32.f32 %v1483
      %v1644 = vcvt.s32.f32 %v1484
      %v1645 = vcvt.s32.f32 %v1485
      %v1646 = vcvt.s32.f32 %v1486
      %v1647 = vcvt.s32.f32 %v1487
      %v1648 = vcvt.s32.f32 %v1488
      %v1649 = vcvt.s32.f32 %v1489
      %v1650 = vcvt.s32.f32 %v1490
      %v1651 = vcvt.s32.f32 %v1491
      %v1652 = vcvt.s32.f32 %v1492
      %v1653 = vcvt.s32.f32 %v1493
      %v1654 = vcvt.s32.f32 %v1494
      %v1655 = vcvt.s32.f32 %v1495
      %v1656 = vcvt.s32.f32 %v1496
      %v1657 = vcvt.s32.f32 %v1497
      %v1658 = vcvt.s32.f32 %v1498
      %v1659 = vcvt.s32.f32 %v1499
      %v1660 = vcvt.s32.f32 %v1500
      %v1661 = vcvt.s32.f32 %v1501
      %v1662 = vcvt.s32.f32 %v1502
      %v1663 = vcvt.s32.f32 %v1503
      %v1664 = vcvt.s32.f32 %v1504
      %v1665 = vcvt.s32.f32 %v1505
      %v1666 = vcvt.s32.f32 %v1506
      %v1667 = vcvt.s32.f32 %v1507
      %v1668 = vcvt.s32.f32 %v1508
      %v1669 = vcvt.s32.f32 %v1509
      %v1670 = vcvt.s32.f32 %v1510
      %v1671 = vcvt.s32.f32 %v1511
      %v1672 = vcvt.s32.f32 %v1512
      %v1673 = vcvt.s32.f32 %v1513
      %v1674 = vcvt.s32.f32 %v1514
      %v1675 = vcvt.s32.f32 %v1515
      %v1676 = vcvt.s32.f32 %v1516
      %v1677 = vcvt.s32.f32 %v1517
      %v1678 = vcvt.s32.f32 %v1518
      %v1679 = vcvt.s32.f32 %v1519
      %v1680 = vcvt.s32.f32 %v1520
      %v1681 = vcvt.s32.f32 %v1521
      %v1682 = vcvt.s32.f32 %v1522
      %v1683 = vcvt.s32.f32 %v1523
      %v1684 = vcvt.s32.f32 %v1524
      %v1685 = vcvt.s32.f32 %v1525
      %v1686 = vcvt.s32.f32 %v1526
      %v1687 = vcvt.s32.f32 %v1527
      %v1688 = vcvt.s32.f32 %v1528
      %v1689 = vcvt.s32.f32 %v1529
      %v1690 = vcvt.s32.f32 %v1530
      %v1691 = vcvt.s32.f32 %v1531
      %v1692 = vcvt.s32.f32 %v1532
      %v1693 = vcvt.s32.f32 %v1533
      %v1694 = vcvt.s32.f32 %v1534
      %v1695 = vcvt.s32.f32 %v1535
      %v1696 = vcvt.s32.f32 %v1536
      %v1697 = vcvt.s32.f32 %v1537
      %v1698 = vcvt.s32.f32 %v1538
      %v1699 = vcvt.s32.f32 %v1539
      %v1700 = vcvt.s32.f32 %v1540
      %v1701 = vcvt.s32.f32 %v1541
      %v1702 = vcvt.s32.f32 %v1542
      %v1703 = vcvt.s32.f32 %v1543
      %v1704 = vcvt.s32.f32 %v1544
      %v1705 = vcvt.s32.f32 %v1545
      %v1706 = vcvt.s32.f32 %v1546
      %v1707 = vcvt.s32.f32 %v1547
      %v1708 = vcvt.s32.f32 %v1548
      %v1709 = vcvt.s32.f32 %v1549
      %v1710 = vcvt.s32.f32 %v1550
      %v1711 = vcvt.s32.f32 %v1551
      %v1712 = vcvt.s32.f32 %v1552
      %v1713 = vcvt.s32.f32 %v1553
      %v1714 = vcvt.s32.f32 %v1554
      %v1715 = vcvt.s32.f32 %v1555
      %v1716 = vcvt.s32.f32 %v1556
      %v1717 = vcvt.s32.f32 %v1557
      %v1718 = vcvt.s32.f32 %v1558
      %v1719 = vcvt.s32.f32 %v1559
      %v1720 = vcvt.s32.f32 %v1560
      %v1721 = vcvt.s32.f32 %v1561
      %v1722 = vcvt.s32.f32 %v1562
      %v1723 = vcvt.s32.f32 %v1563
      %v1724 = vcvt.s32.f32 %v1564
      %v1725 = vcvt.s32.f32 %v1565
      %v1726 = vcvt.s32.f32 %v1566
      %v1727 = vcvt.s32.f32 %v1567
      %v1728 = vcvt.s32.f32 %v1568
      %v1729 = vcvt.s32.f32 %v1569
      %v1730 = vcvt.s32.f32 %v1570
      %v1731 = vcvt.s32.f32 %v1571
      %v1732 = vcvt.s32.f32 %v1572
      %v1733 = vcvt.s32.f32 %v1573
      %v1734 = vcvt.s32.f32 %v1574
      %v1735 = vcvt.s32.f32 %v1575
      %v1736 = vcvt.s32.f32 %v1576
      %v1737 = vcvt.s32.f32 %v1577
      %v1738 = vcvt.s32.f32 %v1578
      %v1739 = vcvt.s32.f32 %v1579
      %v1740 = vcvt.s32.f32 %v1580
      %v1741 = vcvt.s32.f32 %v1581
      %v1742 = vcvt.s32.f32 %v1582
      %v1743 = vcvt.s32.f32 %v1583
      %v1744 = vcvt.s32.f32 %v1584
      %v1745 = vcvt.s32.f32 %v1585
      %v1746 = vcvt.s32.f32 %v1586
      %v1747 = vcvt.s32.f32 %v1587
      %v1748 = vcvt.s32.f32 %v1588
      %v1749 = vcvt.s32.f32 %v1589
      %v1750 = vcvt.s32.f32 %v1590
      %v1751 = vcvt.s32.f32 %v1591
      %v1752 = vcvt.s32.f32 %v1592
      %v1753 = vcvt.s32.f32 %v1593
      %v1754 = vcvt.s32.f32 %v1594
      %v1755 = vcvt.s32.f32 %v1595
      %v1756 = vcvt.s32.f32 %v1596
      %v1757 = vcvt.s32.f32 %v1597
      %v1758 = vcvt.s32.f32 %v1598
      %v1759 = vcvt.s32.f32 %v1599
      %v1760 = vcvt.s32.f32 %v1600
      %v1761 = vcvt.s32.f32 %v1601
      %v1762 = vcvt.s32.f32 %v1602
      %v1763 = vcvt.s32.f32 %v1603
      %v1764 = vcvt.s32.f32 %v1604
      %v1765 = vcvt.s32.f32 %v1605
      %v1766 = vcvt.s32.f32 %v1606
      %v1767 = vcvt.s32.f32 %v1607
      %v1768 = vcvt.s32.f32 %v1608
      %v1769 = vcvt.s32.f32 %v1609
      %v1770 = vcvt.s32.f32 %v1610
      %v1771 = vcvt.s32.f32 %v1611
      %v1772 = vcvt.s32.f32 %v1612
      %v1773 = vcvt.s32.f32 %v1613
      %v1774 = vcvt.s32.f32 %v1614
      %v1775 = vcvt.s32.f32 %v1615
      %v1776 = vcvt.s32.f32 %v1616
      %v1777 = vcvt.s32.f32 %v1617
      %v1778 = vcvt.s32.f32 %v1618
      %v1779 = vcvt.s32.f32 %v1619
      %v1780 = vcvt.s32.f32 %v1620
      %v1781 = vcvt.s32.f32 %v1621
      %v1782 = vcvt.s32.f32 %v1622
      %v1783 = vcvt.s32.f32 %v1623
      %v1784 = vcvt.s32.f32 %v1624
      %v1785 = vcvt.s32.f32 %v1625
      %v1786 = vcvt.s32.f32 %v1626
      %v1787 = vcvt.s32.f32 %v1627
      %v1788 = vcvt.s32.f32 %v1628
      %v1789 = vcvt.s32.f32 %v1629
      %v1790 = vadd.f32 %v1630, %v1631
      %v1791 = vadd.f32 %v1790, %v1632
      %v1792 = vadd.f32 %v1791, %v1633
      %v1793 = vadd.f32 %v1792, %v1634
      %v1794 = vadd.f32 %v1793, %v1635
      %v1795 = vadd.f32 %v1794, %v1636
      %v1796 = vadd.f32 %v1795, %v1637
      %v1797 = vadd.f32 %v1796, %v1638
      %v1798 = vadd.f32 %v1797, %v1639
      %v1799 = vadd.f32 %v1798, %v1640
      %v1800 = vadd.f32 %v1799, %v1641
      %v1801 = vadd.f32 %v1800, %v1642
      %v1802 = vadd.f32 %v1801, %v1643
      %v1803 = vadd.f32 %v1802, %v1644
      %v1804 = vadd.f32 %v1803, %v1645
      %v1805 = vadd.f32 %v1804, %v1646
      %v1806 = vadd.f32 %v1805, %v1647
      %v1807 = vadd.f32 %v1806, %v1648
      %v1808 = vadd.f32 %v1807, %v1649
      %v1809 = vadd.f32 %v1808, %v1650
      %v1810 = vadd.f32 %v1809, %v1651
      %v1811 = vadd.f32 %v1810, %v1652
      %v1812 = vadd.f32 %v1811, %v1653
      %v1813 = vadd.f32 %v1812, %v1654
      %v1814 = vadd.f32 %v1813, %v1655
      %v1815 = vadd.f32 %v1814, %v1656
      %v1816 = vadd.f32 %v1815, %v1657
      %v1817 = vadd.f32 %v1816, %v1658
      %v1818 = vadd.f32 %v1817, %v1659
      %v1819 = vadd.f32 %v1818, %v1660
      %v1820 = vadd.f32 %v1819, %v1661
      %1821 = vadd.xlane.f32.xlu0 %v1820
      %v1822 = vpop.xlane.xlu0 %1821
      %v1823 = vadd.f32 %v1662, %v1663
      %v1824 = vadd.f32 %v1823, %v1664
      %v1825 = vadd.f32 %v1824, %v1665
      %v1826 = vadd.f32 %v1825, %v1666
      %v1827 = vadd.f32 %v1826, %v1667
      %v1828 = vadd.f32 %v1827, %v1668
      %v1829 = vadd.f32 %v1828, %v1669
      %v1830 = vadd.f32 %v1829, %v1670
      %v1831 = vadd.f32 %v1830, %v1671
      %v1832 = vadd.f32 %v1831, %v1672
      %v1833 = vadd.f32 %v1832, %v1673
      %v1834 = vadd.f32 %v1833, %v1674
      %v1835 = vadd.f32 %v1834, %v1675
      %v1836 = vadd.f32 %v1835, %v1676
      %v1837 = vadd.f32 %v1836, %v1677
      %v1838 = vadd.f32 %v1837, %v1678
      %v1839 = vadd.f32 %v1838, %v1679
      %v1840 = vadd.f32 %v1839, %v1680
      %v1841 = vadd.f32 %v1840, %v1681
      %v1842 = vadd.f32 %v1841, %v1682
      %v1843 = vadd.f32 %v1842, %v1683
      %v1844 = vadd.f32 %v1843, %v1684
      %v1845 = vadd.f32 %v1844, %v1685
      %v1846 = vadd.f32 %v1845, %v1686
      %v1847 = vadd.f32 %v1846, %v1687
      %v1848 = vadd.f32 %v1847, %v1688
      %v1849 = vadd.f32 %v1848, %v1689
      %v1850 = vadd.f32 %v1849, %v1690
      %v1851 = vadd.f32 %v1850, %v1691
      %v1852 = vadd.f32 %v1851, %v1692
      %v1853 = vadd.f32 %v1852, %v1693
      %1854 = vadd.xlane.f32.xlu0 %v1853
      %v1855 = vpop.xlane.xlu0 %1854
      %v1856 = vadd.f32 %v1694, %v1695
      %v1857 = vadd.f32 %v1856, %v1696
      %v1858 = vadd.f32 %v1857, %v1697
      %v1859 = vadd.f32 %v1858, %v1698
      %v1860 = vadd.f32 %v1859, %v1699
      %v1861 = vadd.f32 %v1860, %v1700
      %v1862 = vadd.f32 %v1861, %v1701
      %v1863 = vadd.f32 %v1862, %v1702
      %v1864 = vadd.f32 %v1863, %v1703
      %v1865 = vadd.f32 %v1864, %v1704
      %v1866 = vadd.f32 %v1865, %v1705
      %v1867 = vadd.f32 %v1866, %v1706
      %v1868 = vadd.f32 %v1867, %v1707
      %v1869 = vadd.f32 %v1868, %v1708
      %v1870 = vadd.f32 %v1869, %v1709
      %v1871 = vadd.f32 %v1870, %v1710
      %v1872 = vadd.f32 %v1871, %v1711
      %v1873 = vadd.f32 %v1872, %v1712
      %v1874 = vadd.f32 %v1873, %v1713
      %v1875 = vadd.f32 %v1874, %v1714
      %v1876 = vadd.f32 %v1875, %v1715
      %v1877 = vadd.f32 %v1876, %v1716
      %v1878 = vadd.f32 %v1877, %v1717
      %v1879 = vadd.f32 %v1878, %v1718
      %v1880 = vadd.f32 %v1879, %v1719
      %v1881 = vadd.f32 %v1880, %v1720
      %v1882 = vadd.f32 %v1881, %v1721
      %v1883 = vadd.f32 %v1882, %v1722
      %v1884 = vadd.f32 %v1883, %v1723
      %v1885 = vadd.f32 %v1884, %v1724
      %v1886 = vadd.f32 %v1885, %v1725
      %1887 = vadd.xlane.f32.xlu0 %v1886
      %v1888 = vpop.xlane.xlu0 %1887
      %v1889 = vadd.f32 %v1726, %v1727
      %v1890 = vadd.f32 %v1889, %v1728
      %v1891 = vadd.f32 %v1890, %v1729
      %v1892 = vadd.f32 %v1891, %v1730
      %v1893 = vadd.f32 %v1892, %v1731
      %v1894 = vadd.f32 %v1893, %v1732
      %v1895 = vadd.f32 %v1894, %v1733
      %v1896 = vadd.f32 %v1895, %v1734
      %v1897 = vadd.f32 %v1896, %v1735
      %v1898 = vadd.f32 %v1897, %v1736
      %v1899 = vadd.f32 %v1898, %v1737
      %v1900 = vadd.f32 %v1899, %v1738
      %v1901 = vadd.f32 %v1900, %v1739
      %v1902 = vadd.f32 %v1901, %v1740
      %v1903 = vadd.f32 %v1902, %v1741
      %v1904 = vadd.f32 %v1903, %v1742
      %v1905 = vadd.f32 %v1904, %v1743
      %v1906 = vadd.f32 %v1905, %v1744
      %v1907 = vadd.f32 %v1906, %v1745
      %v1908 = vadd.f32 %v1907, %v1746
      %v1909 = vadd.f32 %v1908, %v1747
      %v1910 = vadd.f32 %v1909, %v1748
      %v1911 = vadd.f32 %v1910, %v1749
      %v1912 = vadd.f32 %v1911, %v1750
      %v1913 = vadd.f32 %v1912, %v1751
      %v1914 = vadd.f32 %v1913, %v1752
      %v1915 = vadd.f32 %v1914, %v1753
      %v1916 = vadd.f32 %v1915, %v1754
      %v1917 = vadd.f32 %v1916, %v1755
      %v1918 = vadd.f32 %v1917, %v1756
      %v1919 = vadd.f32 %v1918, %v1757
      %1920 = vadd.xlane.f32.xlu0 %v1919
      %v1921 = vpop.xlane.xlu0 %1920
      %v1922 = vsel %vm1175, %v1758, 0.0
      %v1923 = vsel %vm1175, %v1759, 0.0
      %v1924 = vadd.f32 %v1922, %v1923
      %v1925 = vsel %vm1175, %v1760, 0.0
      %v1926 = vadd.f32 %v1924, %v1925
      %v1927 = vsel %vm1175, %v1761, 0.0
      %v1928 = vadd.f32 %v1926, %v1927
      %v1929 = vsel %vm1175, %v1762, 0.0
      %v1930 = vadd.f32 %v1928, %v1929
      %v1931 = vsel %vm1175, %v1763, 0.0
      %v1932 = vadd.f32 %v1930, %v1931
      %v1933 = vsel %vm1175, %v1764, 0.0
      %v1934 = vadd.f32 %v1932, %v1933
      %v1935 = vsel %vm1175, %v1765, 0.0
      %v1936 = vadd.f32 %v1934, %v1935
      %v1937 = vsel %vm1175, %v1766, 0.0
      %v1938 = vadd.f32 %v1936, %v1937
      %v1939 = vsel %vm1175, %v1767, 0.0
      %v1940 = vadd.f32 %v1938, %v1939
      %v1941 = vsel %vm1175, %v1768, 0.0
      %v1942 = vadd.f32 %v1940, %v1941
      %v1943 = vsel %vm1175, %v1769, 0.0
      %v1944 = vadd.f32 %v1942, %v1943
      %v1945 = vsel %vm1175, %v1770, 0.0
      %v1946 = vadd.f32 %v1944, %v1945
      %v1947 = vsel %vm1175, %v1771, 0.0
      %v1948 = vadd.f32 %v1946, %v1947
      %v1949 = vsel %vm1175, %v1772, 0.0
      %v1950 = vadd.f32 %v1948, %v1949
      %v1951 = vsel %vm1175, %v1773, 0.0
      %v1952 = vadd.f32 %v1950, %v1951
      %v1953 = vsel %vm1175, %v1774, 0.0
      %v1954 = vadd.f32 %v1952, %v1953
      %v1955 = vsel %vm1175, %v1775, 0.0
      %v1956 = vadd.f32 %v1954, %v1955
      %v1957 = vsel %vm1175, %v1776, 0.0
      %v1958 = vadd.f32 %v1956, %v1957
      %v1959 = vsel %vm1175, %v1777, 0.0
      %v1960 = vadd.f32 %v1958, %v1959
      %v1961 = vsel %vm1175, %v1778, 0.0
      %v1962 = vadd.f32 %v1960, %v1961
      %v1963 = vsel %vm1175, %v1779, 0.0
      %v1964 = vadd.f32 %v1962, %v1963
      %v1965 = vsel %vm1175, %v1780, 0.0
      %v1966 = vadd.f32 %v1964, %v1965
      %v1967 = vsel %vm1175, %v1781, 0.0
      %v1968 = vadd.f32 %v1966, %v1967
      %v1969 = vsel %vm1175, %v1782, 0.0
      %v1970 = vadd.f32 %v1968, %v1969
      %v1971 = vsel %vm1175, %v1783, 0.0
      %v1972 = vadd.f32 %v1970, %v1971
      %v1973 = vsel %vm1175, %v1784, 0.0
      %v1974 = vadd.f32 %v1972, %v1973
      %v1975 = vsel %vm1175, %v1785, 0.0
      %v1976 = vadd.f32 %v1974, %v1975
      %v1977 = vsel %vm1175, %v1786, 0.0
      %v1978 = vadd.f32 %v1976, %v1977
      %v1979 = vsel %vm1175, %v1787, 0.0
      %v1980 = vadd.f32 %v1978, %v1979
      %v1981 = vsel %vm1175, %v1788, 0.0
      %v1982 = vadd.f32 %v1980, %v1981
      %v1983 = vsel %vm1175, %v1789, 0.0
      %v1984 = vadd.f32 %v1982, %v1983
      %1985 = vadd.xlane.f32.xlu0 %v1984
      %v1986 = vpop.xlane.xlu0 %1985
      %v1987 = vadd.f32 %v1465, %v1822
      %v1988 = vadd.f32 %v1466, %v1855
      %v1989 = vadd.f32 %v1467, %v1888
      %v1990 = vadd.f32 %v1468, %v1921
      %v1991 = vadd.f32 %v1469, %v1986
      %1992 = vst.msk [vmem:[%s334] sm:$0xff] %vm1246, %v1987
      %1993 = vst.msk [vmem:[%s334 + $0x8] sm:$0xff] %vm1246, %v1988
      %1994 = vst.msk [vmem:[%s334 + $0x10] sm:$0xff] %vm1246, %v1989
      %1995 = vst.msk [vmem:[%s334 + $0x18] sm:$0xff] %vm1246, %v1990
      %1996 = vst.msk [vmem:[%s334 + $0x20] sm:$0xf] %vm1251, %v1991
      %p1997 = scmp.lt.s32.totalorder %s21, 1
      %s1998 = scalar_select %p1997, %s21, 1
      %p1999 = scmp.lt.s32.totalorder %s22, 0
      %s2000 = scalar_select %p1999, %s22, 0
      %s2001 = smul.addr %s2000, 5
      %s2002 = smul.addr %s1998, 5
      %s2003 = sadd.s32 %s2001, %s2002
      %s2004 = smul.addr %s2003, 8
      %s2005 = scalar_lea.vmem %s2, %s2004
      %p2006 = scmp.lt.s32.totalorder %s21, 1
      %s2007 = scalar_select %p2006, %s21, 1
      %p2008 = scmp.lt.s32.totalorder %s22, 0
      %s2009 = scalar_select %p2008, %s22, 0
      %s2010 = smul.addr %s2009, 5
      %s2011 = smul.addr %s2007, 5
      %s2012 = sadd.s32 %s2010, %s2011
      %s2013 = smul.addr %s2012, 8
      %s2014 = scalar_lea.vmem %s3, %s2013
      %p2015 = scmp.lt.s32.totalorder %s21, 1
      %s2016 = scalar_select %p2015, %s21, 1
      %p2017 = scmp.lt.s32.totalorder %s22, 0
      %s2018 = scalar_select %p2017, %s22, 0
      %s2019 = smul.addr %s2018, 5
      %s2020 = smul.addr %s2016, 5
      %s2021 = sadd.s32 %s2019, %s2020
      %s2022 = smul.addr %s2021, 8
      %s2023 = scalar_lea.vmem %s4, %s2022
      // Predicated region
      $region33: #{dice_loss.1} parent=27 // pred_check
        %p2024 = pneg %p115
      $region34: #{dice_loss.1} parent=27 // pred_check_branch
        %2026 = sbr.rel (%p2024) target = $region36
      $region35: #{dice_loss.1} parent=27 // pred_region
        _
      $region36: #{dice_loss.1} parent=27 // pred_fallthru
        _
      // Predicated region
      $region37: #{dice_loss.1} parent=27 // pred_check
        %p2027 = pneg %p143
      $region38: #{dice_loss.1} parent=27 // pred_check_branch
        %2029 = sbr.rel (%p2027) target = $region40
      $region39: #{dice_loss.1} parent=27 // pred_region
        _
      $region40: #{dice_loss.1} parent=27 // pred_fallthru
        _
      // Predicated region
      $region41: #{dice_loss.1} parent=27 // pred_check
        %p2030 = pneg %p171
      $region42: #{dice_loss.1} parent=27 // pred_check_branch
        %2032 = sbr.rel (%p2030) target = $region44
      $region43: #{dice_loss.1} parent=27 // pred_region
        _
      $region44: #{dice_loss.1} parent=27 // pred_fallthru
        _
    $region28: #{dice_loss.1} parent=5 // pred_fallthru
      _
    %p2033 = scmp.le.s32.totalorder 2, %s11
    // Predicated region
    $region45: #{dice_loss.1} parent=5 // pred_check
      %p2034 = pneg %p2033
    $region46: #{dice_loss.1} parent=5 // pred_check_branch
      %2036 = sbr.rel (%p2034) target = $region48
    $region47: #{dice_loss.1} parent=5 // pred_region
      %s2037 = ssub.s32 %s11, 2
      // Predicated region
      $region49: #{dice_loss.1} parent=47 // pred_check
        %p2038 = pneg %p121
      $region50: #{dice_loss.1} parent=47 // pred_check_branch
        %2040 = sbr.rel (%p2038) target = $region52
      $region51: #{dice_loss.1} parent=47 // pred_region
        %p2041 = scmp.lt.s32.totalorder %s24, 1
        %s2042 = scalar_select %p2041, %s24, 1
        %p2043 = scmp.lt.s32.totalorder %s25, 0
        %s2044 = scalar_select %p2043, %s25, 0
        %s2045 = smul.addr %s2044, 5
        %s2046 = smul.addr %s2042, 5
        %s2047 = sadd.s32 %s2045, %s2046
        %s2048 = smul.addr %s2047, 8
        %s2049 = scalar_lea.vmem %s2, %s2048
      $region52: #{dice_loss.1} parent=47 // pred_fallthru
        _
      // Predicated region
      $region53: #{dice_loss.1} parent=47 // pred_check
        %p2050 = pneg %p149
      $region54: #{dice_loss.1} parent=47 // pred_check_branch
        %2052 = sbr.rel (%p2050) target = $region56
      $region55: #{dice_loss.1} parent=47 // pred_region
        %p2053 = scmp.lt.s32.totalorder %s24, 1
        %s2054 = scalar_select %p2053, %s24, 1
        %p2055 = scmp.lt.s32.totalorder %s25, 0
        %s2056 = scalar_select %p2055, %s25, 0
        %s2057 = smul.addr %s2056, 5
        %s2058 = smul.addr %s2054, 5
        %s2059 = sadd.s32 %s2057, %s2058
        %s2060 = smul.addr %s2059, 8
        %s2061 = scalar_lea.vmem %s3, %s2060
      $region56: #{dice_loss.1} parent=47 // pred_fallthru
        _
      // Predicated region
      $region57: #{dice_loss.1} parent=47 // pred_check
        %p2062 = pneg %p177
      $region58: #{dice_loss.1} parent=47 // pred_check_branch
        %2064 = sbr.rel (%p2062) target = $region60
      $region59: #{dice_loss.1} parent=47 // pred_region
        %p2065 = scmp.lt.s32.totalorder %s24, 1
        %s2066 = scalar_select %p2065, %s24, 1
        %p2067 = scmp.lt.s32.totalorder %s25, 0
        %s2068 = scalar_select %p2067, %s25, 0
        %s2069 = smul.addr %s2068, 5
        %s2070 = smul.addr %s2066, 5
        %s2071 = sadd.s32 %s2069, %s2070
        %s2072 = smul.addr %s2071, 8
        %s2073 = scalar_lea.vmem %s4, %s2072
      $region60: #{dice_loss.1} parent=47 // pred_fallthru
        _
    $region48: #{dice_loss.1} parent=5 // pred_fallthru
      _
  $region6: #{dice_loss.1} parent=0 // loop_footer
    %s15 = sadd.s32 1, %s11
  $region7: #{dice_loss.1} parent=0 // loop_footer_branch
    %10 = sbr.rel target = $region3
  $region8: #{dice_loss.1} parent=0 // loop_exit
    _

</llo_original>
